<compile_context>
chip_gen: v7x
topology: tpu7x:2x2x1
jax: 0.10.0
libtpu: 0.0.40
codegen_flags: <defaults>
</compile_context>

<pallas_src>
import functools

import jax
import jax.numpy as jnp
from jax.experimental import pallas as pl
from jax.experimental.pallas import tpu as pltpu


def _round_up(x, m):
    return ((x + m - 1) // m) * m


def _default_pair_steps():
    # Pair timesteps (256-wide matmul outputs) on 256-wide MXUs (v6e/v7x);
    # skip on v5e whose 128-wide MXUs are already fully used by Ep=128.
    try:
        kind = jax.devices()[0].device_kind.lower()
        if "v5 lite" in kind or "v5lite" in kind or "v5e" in kind:
            return False
    except Exception:
        pass
    return True


# ----------------------------- Pallas kernel -------------------------------
def _char_cnn_highway_kernel(ids_ref, wf_ref, cb_ref, whw_ref, bhw_ref,
                             out_ref, slab_ref, *, K, Vp, paired):
    # ids_ref : (TN, W)              int32 char ids for a tile of TN words
    # wf_ref  : ((K+1)*Vp, 2*Ep) bf16 banded paired conv weights   (paired)
    #           (K*Vp, Ep)       bf16 fused conv weights           (unpaired)
    # cb_ref  : (1, Ep)   f32  conv bias
    # whw_ref : (Ep, 2*Ep) bf16  highway proj||gate weights
    # bhw_ref : (1, 2*Ep)  f32   highway proj||gate bias
    # out_ref : (TN, Ep)   f32
    # slab_ref: (TN, Wslab*Vp) bf16 scratch holding the one-hot columns
    TN, W = ids_ref.shape
    Ep = cb_ref.shape[1]
    T = W - K + 1  # valid conv positions

    ids = ids_ref[...]                                            # (TN, W) i32
    lane_iota = jax.lax.broadcasted_iota(jnp.int32, (TN, Vp), 1)  # hoisted

    # Write the W one-hot columns once into the lane-aligned bf16 scratch slab
    # (each timestep's matmul operand is then a static contiguous slice).
    for j in range(W):
        slab_ref[:, j * Vp:(j + 1) * Vp] = (
            ids[:, j:j + 1] == lane_iota).astype(jnp.bfloat16)

    wf = wf_ref[...]

    def dot(a, b):
        return jax.lax.dot_general(
            a, b, dimension_numbers=(((1,), (0,)), ((), ())),
            preferred_element_type=jnp.float32)

    if paired:
        if T % 2 == 1:
            # Zero the extra pad column block used by the last (odd) window.
            slab_ref[:, W * Vp:(W + 1) * Vp] = jnp.zeros((TN, Vp), jnp.bfloat16)

        xmax2 = None
        for p in range(T // 2):                       # static, fully unrolled
            t = 2 * p
            # (TN, (K+1)*Vp) @ ((K+1)*Vp, 2*Ep) -> conv_t || conv_{t+1}
            acc = dot(slab_ref[:, t * Vp:(t + K + 1) * Vp], wf)
            xmax2 = acc if xmax2 is None else jnp.maximum(xmax2, acc)
        xmax = (None if xmax2 is None
                else jnp.maximum(xmax2[:, :Ep], xmax2[:, Ep:]))
        if T % 2 == 1:
            t = T - 1
            acc = dot(slab_ref[:, t * Vp:(t + K + 1) * Vp], wf)[:, :Ep]
            xmax = acc if xmax is None else jnp.maximum(xmax, acc)
    else:
        xmax = None
        for t in range(T):                            # static, fully unrolled
            acc = dot(slab_ref[:, t * Vp:(t + K) * Vp], wf)       # (TN, Ep)
            xmax = acc if xmax is None else jnp.maximum(xmax, acc)

    # Conv bias + ReLU hoisted out of the time loop (monotone elementwise).
    x = jnp.maximum(xmax + cb_ref[...], 0.0)                      # (TN, Ep) f32

    # Highway: one fused (TN,Ep)@(Ep,2*Ep) matmul producing proj||gate.
    hg = dot(x.astype(jnp.bfloat16), whw_ref[...]) + bhw_ref[...]
    proj = jnp.maximum(hg[:, :Ep], 0.0)
    gate = jax.nn.sigmoid(hg[:, Ep:])
    out_ref[...] = (x + gate * (proj - x)).astype(out_ref.dtype)


# ------------------------- one-time weight prep ------------------------------
def prepare_model_embeddings(params, pair_steps=None):
    """Fold the char embedding into the conv taps, pad to lane-dense shapes,
    cast to bf16 and fuse the highway weights.  Call once per weight update."""
    if pair_steps is None:
        pair_steps = _default_pair_steps()

    emb = params["emb"].astype(jnp.float32)          # (V, E)
    cw = params["cw"].astype(jnp.float32)            # (K, E, E)
    V, E = emb.shape
    K = cw.shape[0]
    Ep = _round_up(max(E, 128), 128)
    Vp = _round_up(max(V, 128), 128)

    # Wfold[k] = emb @ cw[k]  -> the embedding gather becomes a one-hot matmul.
    wfold = jnp.einsum("ve,keo->kvo", emb, cw)                     # (K, V, E)
    wfold = jnp.pad(wfold, ((0, 0), (0, Vp - V), (0, Ep - E)))     # (K, Vp, Ep)

    if pair_steps:
        zeros = jnp.zeros((1, Vp, Ep), jnp.float32)
        left = jnp.concatenate([wfold, zeros], axis=0)             # conv_t
        right = jnp.concatenate([zeros, wfold], axis=0)            # conv_{t+1}
        wf = jnp.concatenate([left, right], axis=-1)               # (K+1,Vp,2Ep)
        wf = wf.reshape((K + 1) * Vp, 2 * Ep)
    else:
        wf = wfold.reshape(K * Vp, Ep)
    wf = wf.astype(jnp.bfloat16)

    cb = jnp.pad(params["cb"].astype(jnp.float32), ((0, 0), (0, Ep - E)))
    wp = jnp.pad(params["wp"].astype(jnp.float32), ((0, Ep - E), (0, Ep - E)))
    wg = jnp.pad(params["wg"].astype(jnp.float32), ((0, Ep - E), (0, Ep - E)))
    whw = jnp.concatenate([wp, wg], axis=1).astype(jnp.bfloat16)   # (Ep, 2Ep)
    bp = jnp.pad(params["bp"].astype(jnp.float32), ((0, 0), (0, Ep - E)))
    bg = jnp.pad(params["bg"].astype(jnp.float32), ((0, 0), (0, Ep - E)))
    bhw = jnp.concatenate([bp, bg], axis=1)                        # (1, 2Ep)

    return dict(wf=wf, cb=cb, whw=whw, bhw=bhw,
                E=E, K=K, Vp=Vp, Ep=Ep, pair_steps=bool(pair_steps))


# ------------------------------- wrapper -------------------------------------
def model_embeddings_forward(input_ids, prepared, *, word_tile=512):
    """input_ids: (S, B, W) int32 -> (S, B, E) float32 (matches PyTorch)."""
    S, B, W = input_ids.shape
    E, K = prepared["E"], prepared["K"]
    Vp, Ep = prepared["Vp"], prepared["Ep"]
    paired = prepared["pair_steps"]
    T = W - K + 1
    assert T >= 1, "max_word_length must be >= conv kernel size"
    Wslab = W + 1 if (paired and T % 2 == 1) else W

    N = S * B
    # Row tiles are multiples of 16 (bf16-friendly sublane tiling), padded
    # tails (never whole-array fallback).
    TN = min(_round_up(word_tile, 16), _round_up(N, 16))
    # Guarantee >= 2 grid steps when possible so "parallel" can shard across
    # v7x's two TensorCores.
    if _round_up(N, TN) // TN < 2 and TN >= 32:
        TN = _round_up(TN // 2, 16)
    N_pad = _round_up(N, TN)

    ids = input_ids.reshape(N, W).astype(jnp.int32)
    if N_pad != N:
        ids = jnp.pad(ids, ((0, N_pad - N), (0, 0)))   # pad rows use char id 0

    wf, cb = prepared["wf"], prepared["cb"]
    whw, bhw = prepared["whw"], prepared["bhw"]

    kernel = functools.partial(_char_cnn_highway_kernel,
                               K=K, Vp=Vp, paired=paired)

    out_flat = pl.pallas_call(
        kernel,
        out_shape=jax.ShapeDtypeStruct((N_pad, Ep), jnp.float32),
        grid=(N_pad // TN,),
        in_specs=[
            pl.BlockSpec((TN, W), lambda i: (i, 0)),           # char ids tile
            pl.BlockSpec(wf.shape, lambda i: (0, 0)),          # fused conv W
            pl.BlockSpec(cb.shape, lambda i: (0, 0)),          # conv bias
            pl.BlockSpec(whw.shape, lambda i: (0, 0)),         # highway W
            pl.BlockSpec(bhw.shape, lambda i: (0, 0)),         # highway bias
        ],
        out_specs=pl.BlockSpec((TN, Ep), lambda i: (i, 0)),    # lane-dense out
        scratch_shapes=[pltpu.VMEM((TN, Wslab * Vp), jnp.bfloat16)],
        compiler_params=pltpu.CompilerParams(
            dimension_semantics=("parallel",)),
    )(ids, wf, cb, whw, bhw)

    return out_flat[:N, :E].reshape(S, B, E)


# --------------------------- pure-JAX reference ------------------------------
def reference_forward(input_ids, params):
    S, B, W = input_ids.shape
    E = params["emb"].shape[1]
    K = params["cw"].shape[0]
    T = W - K + 1
    emb = params["emb"][input_ids].reshape(S * B, W, E).astype(jnp.float32)
    conv = jnp.zeros((S * B, T, E), jnp.float32)
    for k in range(K):
        conv = conv + jnp.einsum("nte,eo->nto", emb[:, k:k + T, :], params["cw"][k])
    conv = conv + params["cb"]
    x = jnp.max(jnp.maximum(conv, 0.0), axis=1)
    proj = jnp.maximum(x @ params["wp"] + params["bp"][0], 0.0)
    gate = jax.nn.sigmoid(x @ params["wg"] + params["bg"][0])
    out = gate * proj + (1.0 - gate) * x
    return out.reshape(S, B, E)


# ------------------------------- params --------------------------------------
def init_params(key, vocab_size, embed_size, kernel_size=5, pad_idx=0):
    ks = jax.random.split(key, 7)
    scale = 0.1
    emb = scale * jax.random.normal(ks[0], (vocab_size, embed_size), jnp.float32)
    emb = emb.at[pad_idx].set(0.0)  # nn.Embedding padding_idx row zeroed at init
    cw = scale * jax.random.normal(ks[1], (kernel_size, embed_size, embed_size), jnp.float32)
    cb = scale * jax.random.normal(ks[2], (1, embed_size), jnp.float32)
    wp = scale * jax.random.normal(ks[3], (embed_size, embed_size), jnp.float32)
    bp = scale * jax.random.normal(ks[4], (1, embed_size), jnp.float32)
    wg = scale * jax.random.normal(ks[5], (embed_size, embed_size), jnp.float32)
    bg = scale * jax.random.normal(ks[6], (1, embed_size), jnp.float32)
    return dict(emb=emb, cw=cw, cb=cb, wp=wp, bp=bp, wg=wg, bg=bg)


# --------------------------------- main ---------------------------------------
if __name__ == "__main__":
    E, K, VOCAB = 32, 5, 64   # embed_size, conv kernel size, char vocab size
    key = jax.random.PRNGKey(0)

    # (S, B, W, pair_steps): even-T default path, odd-T paired path, unpaired.
    configs = [
        (12, 3, 16, None),    # multi-step grid + padded tail, even T
        (6, 2, 17, True),     # paired path with odd T (uses the zero pad block)
        (8, 2, 16, False),    # explicit unpaired (v5e-style) path
    ]
    for (S, B, W, pair) in configs:
        key, k_ids, k_params = jax.random.split(key, 3)
        params = init_params(k_params, VOCAB, E, kernel_size=K, pad_idx=0)
        prepared = prepare_model_embeddings(params, pair_steps=pair)
        input_ids = jax.random.randint(k_ids, (S, B, W), minval=0, maxval=VOCAB,
                                       dtype=jnp.int32)

        out = jax.block_until_ready(model_embeddings_forward(input_ids, prepared))
        assert out.shape == (S, B, E), out.shape

        ref = jax.block_until_ready(reference_forward(input_ids, params))
        assert jnp.all(jnp.isfinite(out))
        err = float(jnp.max(jnp.abs(out - ref)))
        assert jnp.allclose(out, ref, atol=1e-2, rtol=1e-2), err

    print("KERNEL_OK")
</pallas_src>

<mosaic_0001>
module attributes {stable_mosaic.version = 11 : i64} {
  func.func @_char_cnn_highway_kernel(%arg0: i32, %arg1: memref<32x16xi32, #tpu.memory_space<vmem>>, %arg2: memref<768x256xbf16, #tpu.memory_space<vmem>>, %arg3: memref<1x128xf32, #tpu.memory_space<vmem>>, %arg4: memref<128x256xbf16, #tpu.memory_space<vmem>>, %arg5: memref<1x256xf32, #tpu.memory_space<vmem>>, %arg6: memref<32x128xf32, #tpu.memory_space<vmem>>, %arg7: memref<32x2048xbf16, #tpu.memory_space<vmem>>) attributes {dimension_semantics = [#tpu.dimension_semantics<parallel>], iteration_bounds = array<i64: 2>, scalar_prefetch = 0 : i64, scratch_operands = 1 : i64, tpu.core_type = #tpu.core_type<tc>, window_params = [{transform_indices = @transform_0, window_bounds = array<i64: 32, 16>}, {pipeline_mode = #tpu.pipeline_mode<synchronous>, transform_indices = @transform_1, window_bounds = array<i64: 768, 256>}, {pipeline_mode = #tpu.pipeline_mode<synchronous>, transform_indices = @transform_2, window_bounds = array<i64: 1, 128>}, {pipeline_mode = #tpu.pipeline_mode<synchronous>, transform_indices = @transform_3, window_bounds = array<i64: 128, 256>}, {pipeline_mode = #tpu.pipeline_mode<synchronous>, transform_indices = @transform_4, window_bounds = array<i64: 1, 256>}, {transform_indices = @transform_5, window_bounds = array<i64: 32, 128>}]} {
    %c0 = arith.constant 0 : index
    %c0_0 = arith.constant 0 : index
    %0 = vector.load %arg1[%c0, %c0_0] : memref<32x16xi32, #tpu.memory_space<vmem>>, vector<32x16xi32>
    %1 = tpu.iota {dimensions = array<i32: 1>} : vector<32x128xi32>
    %2 = vector.extract_strided_slice %0 {offsets = [0, 0], sizes = [32, 1], strides = [1, 1]} : vector<32x16xi32> to vector<32x1xi32>
    %3 = vector.broadcast %2 : vector<32x1xi32> to vector<32x128xi32>
    %4 = arith.cmpi eq, %3, %1 : vector<32x128xi32>
    %5 = arith.extui %4 : vector<32x128xi1> to vector<32x128xi32>
    %6 = arith.sitofp %5 : vector<32x128xi32> to vector<32x128xf32>
    %7 = arith.truncf %6 : vector<32x128xf32> to vector<32x128xbf16>
    %c0_1 = arith.constant 0 : index
    %c0_2 = arith.constant 0 : index
    %8 = vector.load %arg7[%c0_1, %c0_2] : memref<32x2048xbf16, #tpu.memory_space<vmem>>, vector<32x128xbf16>
    tpu.vector_store %arg7[%c0_1, %c0_2], %7 {strides = array<i32>} : memref<32x2048xbf16, #tpu.memory_space<vmem>>, vector<32x128xbf16>,
    %9 = vector.extract_strided_slice %0 {offsets = [0, 1], sizes = [32, 1], strides = [1, 1]} : vector<32x16xi32> to vector<32x1xi32>
    %10 = vector.broadcast %9 : vector<32x1xi32> to vector<32x128xi32>
    %11 = arith.cmpi eq, %10, %1 : vector<32x128xi32>
    %12 = arith.extui %11 : vector<32x128xi1> to vector<32x128xi32>
    %13 = arith.sitofp %12 : vector<32x128xi32> to vector<32x128xf32>
    %14 = arith.truncf %13 : vector<32x128xf32> to vector<32x128xbf16>
    %c0_3 = arith.constant 0 : index
    %c128 = arith.constant 128 : index
    %15 = vector.load %arg7[%c0_3, %c128] : memref<32x2048xbf16, #tpu.memory_space<vmem>>, vector<32x128xbf16>
    tpu.vector_store %arg7[%c0_3, %c128], %14 {strides = array<i32>} : memref<32x2048xbf16, #tpu.memory_space<vmem>>, vector<32x128xbf16>,
    %16 = vector.extract_strided_slice %0 {offsets = [0, 2], sizes = [32, 1], strides = [1, 1]} : vector<32x16xi32> to vector<32x1xi32>
    %17 = vector.broadcast %16 : vector<32x1xi32> to vector<32x128xi32>
    %18 = arith.cmpi eq, %17, %1 : vector<32x128xi32>
    %19 = arith.extui %18 : vector<32x128xi1> to vector<32x128xi32>
    %20 = arith.sitofp %19 : vector<32x128xi32> to vector<32x128xf32>
    %21 = arith.truncf %20 : vector<32x128xf32> to vector<32x128xbf16>
    %c0_4 = arith.constant 0 : index
    %c256 = arith.constant 256 : index
    %22 = vector.load %arg7[%c0_4, %c256] : memref<32x2048xbf16, #tpu.memory_space<vmem>>, vector<32x128xbf16>
    tpu.vector_store %arg7[%c0_4, %c256], %21 {strides = array<i32>} : memref<32x2048xbf16, #tpu.memory_space<vmem>>, vector<32x128xbf16>,
    %23 = vector.extract_strided_slice %0 {offsets = [0, 3], sizes = [32, 1], strides = [1, 1]} : vector<32x16xi32> to vector<32x1xi32>
    %24 = vector.broadcast %23 : vector<32x1xi32> to vector<32x128xi32>
    %25 = arith.cmpi eq, %24, %1 : vector<32x128xi32>
    %26 = arith.extui %25 : vector<32x128xi1> to vector<32x128xi32>
    %27 = arith.sitofp %26 : vector<32x128xi32> to vector<32x128xf32>
    %28 = arith.truncf %27 : vector<32x128xf32> to vector<32x128xbf16>
    %c0_5 = arith.constant 0 : index
    %c384 = arith.constant 384 : index
    %29 = vector.load %arg7[%c0_5, %c384] : memref<32x2048xbf16, #tpu.memory_space<vmem>>, vector<32x128xbf16>
    tpu.vector_store %arg7[%c0_5, %c384], %28 {strides = array<i32>} : memref<32x2048xbf16, #tpu.memory_space<vmem>>, vector<32x128xbf16>,
    %30 = vector.extract_strided_slice %0 {offsets = [0, 4], sizes = [32, 1], strides = [1, 1]} : vector<32x16xi32> to vector<32x1xi32>
    %31 = vector.broadcast %30 : vector<32x1xi32> to vector<32x128xi32>
    %32 = arith.cmpi eq, %31, %1 : vector<32x128xi32>
    %33 = arith.extui %32 : vector<32x128xi1> to vector<32x128xi32>
    %34 = arith.sitofp %33 : vector<32x128xi32> to vector<32x128xf32>
    %35 = arith.truncf %34 : vector<32x128xf32> to vector<32x128xbf16>
    %c0_6 = arith.constant 0 : index
    %c512 = arith.constant 512 : index
    %36 = vector.load %arg7[%c0_6, %c512] : memref<32x2048xbf16, #tpu.memory_space<vmem>>, vector<32x128xbf16>
    tpu.vector_store %arg7[%c0_6, %c512], %35 {strides = array<i32>} : memref<32x2048xbf16, #tpu.memory_space<vmem>>, vector<32x128xbf16>,
    %37 = vector.extract_strided_slice %0 {offsets = [0, 5], sizes = [32, 1], strides = [1, 1]} : vector<32x16xi32> to vector<32x1xi32>
    %38 = vector.broadcast %37 : vector<32x1xi32> to vector<32x128xi32>
    %39 = arith.cmpi eq, %38, %1 : vector<32x128xi32>
    %40 = arith.extui %39 : vector<32x128xi1> to vector<32x128xi32>
    %41 = arith.sitofp %40 : vector<32x128xi32> to vector<32x128xf32>
    %42 = arith.truncf %41 : vector<32x128xf32> to vector<32x128xbf16>
    %c0_7 = arith.constant 0 : index
    %c640 = arith.constant 640 : index
    %43 = vector.load %arg7[%c0_7, %c640] : memref<32x2048xbf16, #tpu.memory_space<vmem>>, vector<32x128xbf16>
    tpu.vector_store %arg7[%c0_7, %c640], %42 {strides = array<i32>} : memref<32x2048xbf16, #tpu.memory_space<vmem>>, vector<32x128xbf16>,
    %44 = vector.extract_strided_slice %0 {offsets = [0, 6], sizes = [32, 1], strides = [1, 1]} : vector<32x16xi32> to vector<32x1xi32>
    %45 = vector.broadcast %44 : vector<32x1xi32> to vector<32x128xi32>
    %46 = arith.cmpi eq, %45, %1 : vector<32x128xi32>
    %47 = arith.extui %46 : vector<32x128xi1> to vector<32x128xi32>
    %48 = arith.sitofp %47 : vector<32x128xi32> to vector<32x128xf32>
    %49 = arith.truncf %48 : vector<32x128xf32> to vector<32x128xbf16>
    %c0_8 = arith.constant 0 : index
    %c768 = arith.constant 768 : index
    %50 = vector.load %arg7[%c0_8, %c768] : memref<32x2048xbf16, #tpu.memory_space<vmem>>, vector<32x128xbf16>
    tpu.vector_store %arg7[%c0_8, %c768], %49 {strides = array<i32>} : memref<32x2048xbf16, #tpu.memory_space<vmem>>, vector<32x128xbf16>,
    %51 = vector.extract_strided_slice %0 {offsets = [0, 7], sizes = [32, 1], strides = [1, 1]} : vector<32x16xi32> to vector<32x1xi32>
    %52 = vector.broadcast %51 : vector<32x1xi32> to vector<32x128xi32>
    %53 = arith.cmpi eq, %52, %1 : vector<32x128xi32>
    %54 = arith.extui %53 : vector<32x128xi1> to vector<32x128xi32>
    %55 = arith.sitofp %54 : vector<32x128xi32> to vector<32x128xf32>
    %56 = arith.truncf %55 : vector<32x128xf32> to vector<32x128xbf16>
    %c0_9 = arith.constant 0 : index
    %c896 = arith.constant 896 : index
    %57 = vector.load %arg7[%c0_9, %c896] : memref<32x2048xbf16, #tpu.memory_space<vmem>>, vector<32x128xbf16>
    tpu.vector_store %arg7[%c0_9, %c896], %56 {strides = array<i32>} : memref<32x2048xbf16, #tpu.memory_space<vmem>>, vector<32x128xbf16>,
    %58 = vector.extract_strided_slice %0 {offsets = [0, 8], sizes = [32, 1], strides = [1, 1]} : vector<32x16xi32> to vector<32x1xi32>
    %59 = vector.broadcast %58 : vector<32x1xi32> to vector<32x128xi32>
    %60 = arith.cmpi eq, %59, %1 : vector<32x128xi32>
    %61 = arith.extui %60 : vector<32x128xi1> to vector<32x128xi32>
    %62 = arith.sitofp %61 : vector<32x128xi32> to vector<32x128xf32>
    %63 = arith.truncf %62 : vector<32x128xf32> to vector<32x128xbf16>
    %c0_10 = arith.constant 0 : index
    %c1024 = arith.constant 1024 : index
    %64 = vector.load %arg7[%c0_10, %c1024] : memref<32x2048xbf16, #tpu.memory_space<vmem>>, vector<32x128xbf16>
    tpu.vector_store %arg7[%c0_10, %c1024], %63 {strides = array<i32>} : memref<32x2048xbf16, #tpu.memory_space<vmem>>, vector<32x128xbf16>,
    %65 = vector.extract_strided_slice %0 {offsets = [0, 9], sizes = [32, 1], strides = [1, 1]} : vector<32x16xi32> to vector<32x1xi32>
    %66 = vector.broadcast %65 : vector<32x1xi32> to vector<32x128xi32>
    %67 = arith.cmpi eq, %66, %1 : vector<32x128xi32>
    %68 = arith.extui %67 : vector<32x128xi1> to vector<32x128xi32>
    %69 = arith.sitofp %68 : vector<32x128xi32> to vector<32x128xf32>
    %70 = arith.truncf %69 : vector<32x128xf32> to vector<32x128xbf16>
    %c0_11 = arith.constant 0 : index
    %c1152 = arith.constant 1152 : index
    %71 = vector.load %arg7[%c0_11, %c1152] : memref<32x2048xbf16, #tpu.memory_space<vmem>>, vector<32x128xbf16>
    tpu.vector_store %arg7[%c0_11, %c1152], %70 {strides = array<i32>} : memref<32x2048xbf16, #tpu.memory_space<vmem>>, vector<32x128xbf16>,
    %72 = vector.extract_strided_slice %0 {offsets = [0, 10], sizes = [32, 1], strides = [1, 1]} : vector<32x16xi32> to vector<32x1xi32>
    %73 = vector.broadcast %72 : vector<32x1xi32> to vector<32x128xi32>
    %74 = arith.cmpi eq, %73, %1 : vector<32x128xi32>
    %75 = arith.extui %74 : vector<32x128xi1> to vector<32x128xi32>
    %76 = arith.sitofp %75 : vector<32x128xi32> to vector<32x128xf32>
    %77 = arith.truncf %76 : vector<32x128xf32> to vector<32x128xbf16>
    %c0_12 = arith.constant 0 : index
    %c1280 = arith.constant 1280 : index
    %78 = vector.load %arg7[%c0_12, %c1280] : memref<32x2048xbf16, #tpu.memory_space<vmem>>, vector<32x128xbf16>
    tpu.vector_store %arg7[%c0_12, %c1280], %77 {strides = array<i32>} : memref<32x2048xbf16, #tpu.memory_space<vmem>>, vector<32x128xbf16>,
    %79 = vector.extract_strided_slice %0 {offsets = [0, 11], sizes = [32, 1], strides = [1, 1]} : vector<32x16xi32> to vector<32x1xi32>
    %80 = vector.broadcast %79 : vector<32x1xi32> to vector<32x128xi32>
    %81 = arith.cmpi eq, %80, %1 : vector<32x128xi32>
    %82 = arith.extui %81 : vector<32x128xi1> to vector<32x128xi32>
    %83 = arith.sitofp %82 : vector<32x128xi32> to vector<32x128xf32>
    %84 = arith.truncf %83 : vector<32x128xf32> to vector<32x128xbf16>
    %c0_13 = arith.constant 0 : index
    %c1408 = arith.constant 1408 : index
    %85 = vector.load %arg7[%c0_13, %c1408] : memref<32x2048xbf16, #tpu.memory_space<vmem>>, vector<32x128xbf16>
    tpu.vector_store %arg7[%c0_13, %c1408], %84 {strides = array<i32>} : memref<32x2048xbf16, #tpu.memory_space<vmem>>, vector<32x128xbf16>,
    %86 = vector.extract_strided_slice %0 {offsets = [0, 12], sizes = [32, 1], strides = [1, 1]} : vector<32x16xi32> to vector<32x1xi32>
    %87 = vector.broadcast %86 : vector<32x1xi32> to vector<32x128xi32>
    %88 = arith.cmpi eq, %87, %1 : vector<32x128xi32>
    %89 = arith.extui %88 : vector<32x128xi1> to vector<32x128xi32>
    %90 = arith.sitofp %89 : vector<32x128xi32> to vector<32x128xf32>
    %91 = arith.truncf %90 : vector<32x128xf32> to vector<32x128xbf16>
    %c0_14 = arith.constant 0 : index
    %c1536 = arith.constant 1536 : index
    %92 = vector.load %arg7[%c0_14, %c1536] : memref<32x2048xbf16, #tpu.memory_space<vmem>>, vector<32x128xbf16>
    tpu.vector_store %arg7[%c0_14, %c1536], %91 {strides = array<i32>} : memref<32x2048xbf16, #tpu.memory_space<vmem>>, vector<32x128xbf16>,
    %93 = vector.extract_strided_slice %0 {offsets = [0, 13], sizes = [32, 1], strides = [1, 1]} : vector<32x16xi32> to vector<32x1xi32>
    %94 = vector.broadcast %93 : vector<32x1xi32> to vector<32x128xi32>
    %95 = arith.cmpi eq, %94, %1 : vector<32x128xi32>
    %96 = arith.extui %95 : vector<32x128xi1> to vector<32x128xi32>
    %97 = arith.sitofp %96 : vector<32x128xi32> to vector<32x128xf32>
    %98 = arith.truncf %97 : vector<32x128xf32> to vector<32x128xbf16>
    %c0_15 = arith.constant 0 : index
    %c1664 = arith.constant 1664 : index
    %99 = vector.load %arg7[%c0_15, %c1664] : memref<32x2048xbf16, #tpu.memory_space<vmem>>, vector<32x128xbf16>
    tpu.vector_store %arg7[%c0_15, %c1664], %98 {strides = array<i32>} : memref<32x2048xbf16, #tpu.memory_space<vmem>>, vector<32x128xbf16>,
    %100 = vector.extract_strided_slice %0 {offsets = [0, 14], sizes = [32, 1], strides = [1, 1]} : vector<32x16xi32> to vector<32x1xi32>
    %101 = vector.broadcast %100 : vector<32x1xi32> to vector<32x128xi32>
    %102 = arith.cmpi eq, %101, %1 : vector<32x128xi32>
    %103 = arith.extui %102 : vector<32x128xi1> to vector<32x128xi32>
    %104 = arith.sitofp %103 : vector<32x128xi32> to vector<32x128xf32>
    %105 = arith.truncf %104 : vector<32x128xf32> to vector<32x128xbf16>
    %c0_16 = arith.constant 0 : index
    %c1792 = arith.constant 1792 : index
    %106 = vector.load %arg7[%c0_16, %c1792] : memref<32x2048xbf16, #tpu.memory_space<vmem>>, vector<32x128xbf16>
    tpu.vector_store %arg7[%c0_16, %c1792], %105 {strides = array<i32>} : memref<32x2048xbf16, #tpu.memory_space<vmem>>, vector<32x128xbf16>,
    %107 = vector.extract_strided_slice %0 {offsets = [0, 15], sizes = [32, 1], strides = [1, 1]} : vector<32x16xi32> to vector<32x1xi32>
    %108 = vector.broadcast %107 : vector<32x1xi32> to vector<32x128xi32>
    %109 = arith.cmpi eq, %108, %1 : vector<32x128xi32>
    %110 = arith.extui %109 : vector<32x128xi1> to vector<32x128xi32>
    %111 = arith.sitofp %110 : vector<32x128xi32> to vector<32x128xf32>
    %112 = arith.truncf %111 : vector<32x128xf32> to vector<32x128xbf16>
    %c0_17 = arith.constant 0 : index
    %c1920 = arith.constant 1920 : index
    %113 = vector.load %arg7[%c0_17, %c1920] : memref<32x2048xbf16, #tpu.memory_space<vmem>>, vector<32x128xbf16>
    tpu.vector_store %arg7[%c0_17, %c1920], %112 {strides = array<i32>} : memref<32x2048xbf16, #tpu.memory_space<vmem>>, vector<32x128xbf16>,
    %c0_18 = arith.constant 0 : index
    %c0_19 = arith.constant 0 : index
    %114 = vector.load %arg2[%c0_18, %c0_19] : memref<768x256xbf16, #tpu.memory_space<vmem>>, vector<768x256xbf16>
    %c0_20 = arith.constant 0 : index
    %c0_21 = arith.constant 0 : index
    %115 = vector.load %arg7[%c0_20, %c0_21] : memref<32x2048xbf16, #tpu.memory_space<vmem>>, vector<32x768xbf16>
    %cst = arith.constant dense<0.000000e+00> : vector<32x256xf32>
    %116 = tpu.matmul %115, %114, %cst {dimension_numbers = #tpu.dot_dimension_numbers<[1], [0], [0], [1], [0, 0, 1, 1], [], []>} : vector<32x768xbf16>, vector<768x256xbf16>, vector<32x256xf32> -> vector<32x256xf32>
    %c0_22 = arith.constant 0 : index
    %c256_23 = arith.constant 256 : index
    %117 = vector.load %arg7[%c0_22, %c256_23] : memref<32x2048xbf16, #tpu.memory_space<vmem>>, vector<32x768xbf16>
    %cst_24 = arith.constant dense<0.000000e+00> : vector<32x256xf32>
    %118 = tpu.matmul %117, %114, %cst_24 {dimension_numbers = #tpu.dot_dimension_numbers<[1], [0], [0], [1], [0, 0, 1, 1], [], []>} : vector<32x768xbf16>, vector<768x256xbf16>, vector<32x256xf32> -> vector<32x256xf32>
    %119 = arith.maximumf %116, %118 : vector<32x256xf32>
    %c0_25 = arith.constant 0 : index
    %c512_26 = arith.constant 512 : index
    %120 = vector.load %arg7[%c0_25, %c512_26] : memref<32x2048xbf16, #tpu.memory_space<vmem>>, vector<32x768xbf16>
    %cst_27 = arith.constant dense<0.000000e+00> : vector<32x256xf32>
    %121 = tpu.matmul %120, %114, %cst_27 {dimension_numbers = #tpu.dot_dimension_numbers<[1], [0], [0], [1], [0, 0, 1, 1], [], []>} : vector<32x768xbf16>, vector<768x256xbf16>, vector<32x256xf32> -> vector<32x256xf32>
    %122 = arith.maximumf %119, %121 : vector<32x256xf32>
    %c0_28 = arith.constant 0 : index
    %c768_29 = arith.constant 768 : index
    %123 = vector.load %arg7[%c0_28, %c768_29] : memref<32x2048xbf16, #tpu.memory_space<vmem>>, vector<32x768xbf16>
    %cst_30 = arith.constant dense<0.000000e+00> : vector<32x256xf32>
    %124 = tpu.matmul %123, %114, %cst_30 {dimension_numbers = #tpu.dot_dimension_numbers<[1], [0], [0], [1], [0, 0, 1, 1], [], []>} : vector<32x768xbf16>, vector<768x256xbf16>, vector<32x256xf32> -> vector<32x256xf32>
    %125 = arith.maximumf %122, %124 : vector<32x256xf32>
    %c0_31 = arith.constant 0 : index
    %c1024_32 = arith.constant 1024 : index
    %126 = vector.load %arg7[%c0_31, %c1024_32] : memref<32x2048xbf16, #tpu.memory_space<vmem>>, vector<32x768xbf16>
    %cst_33 = arith.constant dense<0.000000e+00> : vector<32x256xf32>
    %127 = tpu.matmul %126, %114, %cst_33 {dimension_numbers = #tpu.dot_dimension_numbers<[1], [0], [0], [1], [0, 0, 1, 1], [], []>} : vector<32x768xbf16>, vector<768x256xbf16>, vector<32x256xf32> -> vector<32x256xf32>
    %128 = arith.maximumf %125, %127 : vector<32x256xf32>
    %c0_34 = arith.constant 0 : index
    %c1280_35 = arith.constant 1280 : index
    %129 = vector.load %arg7[%c0_34, %c1280_35] : memref<32x2048xbf16, #tpu.memory_space<vmem>>, vector<32x768xbf16>
    %cst_36 = arith.constant dense<0.000000e+00> : vector<32x256xf32>
    %130 = tpu.matmul %129, %114, %cst_36 {dimension_numbers = #tpu.dot_dimension_numbers<[1], [0], [0], [1], [0, 0, 1, 1], [], []>} : vector<32x768xbf16>, vector<768x256xbf16>, vector<32x256xf32> -> vector<32x256xf32>
    %131 = arith.maximumf %128, %130 : vector<32x256xf32>
    %132 = vector.extract_strided_slice %131 {offsets = [0, 0], sizes = [32, 128], strides = [1, 1]} : vector<32x256xf32> to vector<32x128xf32>
    %133 = vector.extract_strided_slice %131 {offsets = [0, 128], sizes = [32, 128], strides = [1, 1]} : vector<32x256xf32> to vector<32x128xf32>
    %134 = arith.maximumf %132, %133 : vector<32x128xf32>
    %c0_37 = arith.constant 0 : index
    %c0_38 = arith.constant 0 : index
    %135 = vector.load %arg3[%c0_37, %c0_38] : memref<1x128xf32, #tpu.memory_space<vmem>>, vector<1x128xf32>
    %136 = vector.broadcast %135 : vector<1x128xf32> to vector<32x128xf32>
    %137 = arith.addf %134, %136 : vector<32x128xf32>
    %cst_39 = arith.constant 0.000000e+00 : f32
    %138 = vector.broadcast %cst_39 : f32 to vector<32x128xf32>
    %139 = arith.maximumf %137, %138 : vector<32x128xf32>
    %140 = arith.truncf %139 : vector<32x128xf32> to vector<32x128xbf16>
    %c0_40 = arith.constant 0 : index
    %c0_41 = arith.constant 0 : index
    %141 = vector.load %arg4[%c0_40, %c0_41] : memref<128x256xbf16, #tpu.memory_space<vmem>>, vector<128x256xbf16>
    %cst_42 = arith.constant dense<0.000000e+00> : vector<32x256xf32>
    %142 = tpu.matmul %140, %141, %cst_42 {dimension_numbers = #tpu.dot_dimension_numbers<[1], [0], [0], [1], [0, 0, 1, 1], [], []>} : vector<32x128xbf16>, vector<128x256xbf16>, vector<32x256xf32> -> vector<32x256xf32>
    %c0_43 = arith.constant 0 : index
    %c0_44 = arith.constant 0 : index
    %143 = vector.load %arg5[%c0_43, %c0_44] : memref<1x256xf32, #tpu.memory_space<vmem>>, vector<1x256xf32>
    %144 = vector.broadcast %143 : vector<1x256xf32> to vector<32x256xf32>
    %145 = arith.addf %142, %144 : vector<32x256xf32>
    %146 = vector.extract_strided_slice %145 {offsets = [0, 0], sizes = [32, 128], strides = [1, 1]} : vector<32x256xf32> to vector<32x128xf32>
    %cst_45 = arith.constant 0.000000e+00 : f32
    %147 = vector.broadcast %cst_45 : f32 to vector<32x128xf32>
    %148 = arith.maximumf %146, %147 : vector<32x128xf32>
    %149 = vector.extract_strided_slice %145 {offsets = [0, 128], sizes = [32, 128], strides = [1, 1]} : vector<32x256xf32> to vector<32x128xf32>
    %150 = arith.negf %149 : vector<32x128xf32>
    %151 = math.exp %150 : vector<32x128xf32>
    %cst_46 = arith.constant 1.000000e+00 : f32
    %152 = vector.broadcast %cst_46 : f32 to vector<32x128xf32>
    %153 = arith.addf %152, %151 : vector<32x128xf32>
    %154 = arith.divf %152, %153 : vector<32x128xf32>
    %155 = arith.subf %148, %139 : vector<32x128xf32>
    %156 = arith.mulf %154, %155 : vector<32x128xf32>
    %157 = arith.addf %139, %156 : vector<32x128xf32>
    %c0_47 = arith.constant 0 : index
    %c0_48 = arith.constant 0 : index
    %158 = vector.load %arg6[%c0_47, %c0_48] : memref<32x128xf32, #tpu.memory_space<vmem>>, vector<32x128xf32>
    tpu.vector_store %arg6[%c0_47, %c0_48], %157 {strides = array<i32>} : memref<32x128xf32, #tpu.memory_space<vmem>>, vector<32x128xf32>,
    return
  }
  func.func @transform_0(%arg0: i32) -> (i32, i32) {
    %c0_i32 = arith.constant 0 : i32
    %c0_i32_0 = arith.constant 0 : i32
    return %arg0, %c0_i32 : i32, i32
  }
  func.func @transform_1(%arg0: i32) -> (i32, i32) {
    %c0_i32 = arith.constant 0 : i32
    %c0_i32_0 = arith.constant 0 : i32
    %c0_i32_1 = arith.constant 0 : i32
    return %c0_i32, %c0_i32_0 : i32, i32
  }
  func.func @transform_2(%arg0: i32) -> (i32, i32) {
    %c0_i32 = arith.constant 0 : i32
    %c0_i32_0 = arith.constant 0 : i32
    %c0_i32_1 = arith.constant 0 : i32
    return %c0_i32, %c0_i32_0 : i32, i32
  }
  func.func @transform_3(%arg0: i32) -> (i32, i32) {
    %c0_i32 = arith.constant 0 : i32
    %c0_i32_0 = arith.constant 0 : i32
    %c0_i32_1 = arith.constant 0 : i32
    return %c0_i32, %c0_i32_0 : i32, i32
  }
  func.func @transform_4(%arg0: i32) -> (i32, i32) {
    %c0_i32 = arith.constant 0 : i32
    %c0_i32_0 = arith.constant 0 : i32
    %c0_i32_1 = arith.constant 0 : i32
    return %c0_i32, %c0_i32_0 : i32, i32
  }
  func.func @transform_5(%arg0: i32) -> (i32, i32) {
    %c0_i32 = arith.constant 0 : i32
    %c0_i32_0 = arith.constant 0 : i32
    return %arg0, %c0_i32 : i32, i32
  }
}

</mosaic_0001>

<llo_original>
// kernel: tpu_custom_call.1
$region0: #{tpu_custom_call.1}
  #allocation0 [shape = 'u32[]', space=smem, size = 0x4, offset = 0x4, fixed_abs, tag = 'smem constant byte address 0x4 - core index']
  #allocation1 [shape = 'u32[144,128]{1,0:T(1,128)}', space=vmem, size = 0x12000, scoped, tag = 'internal scratch']
  #allocation2 [shape = 'bf16[32,2048]{1,0:T(16,128)(2,1)}', space=vmem, size = 0x20000, scoped, tag = 'scratch operand']
  %s0 = inlined_call_operand.vmem [shape: s32[64,16], index: 0, kind: input, shape index: {}]
  %s1 = inlined_call_operand.hbm [shape: bf16[768,256], index: 1, kind: input, shape index: {}]
  %s2 = inlined_call_operand.vmem [shape: f32[1,128], index: 2, kind: input, shape index: {}]
  %s3 = inlined_call_operand.hbm [shape: bf16[128,256], index: 3, kind: input, shape index: {}]
  %s4 = inlined_call_operand.vmem [shape: f32[1,256], index: 4, kind: input, shape index: {}]
  %s5 = inlined_call_operand.hbm [shape: f32[64,128], index: 5, kind: output, shape index: {}]
  %s6 = sld [smem:[#allocation0]]
  $region61: #{tpu_custom_call.1} parent=0
    _
  %s8 = ssub.s32 1, %s6
  %s9 = scalar_select 0, %s8, %s6
  $region1: #{tpu_custom_call.1} parent=0
    #allocation3 [shape = 'u8[393216]{0}', space=vmem, size = 0x60000, scoped, tag = 'input window, operand 1, single buffered']
    #allocation4 [shape = 's32[2]{0}', space=sflag, size = 0x8, scoped, tag = 'scoped memory for tpu_custom_call.1']
    #allocation5 [shape = 's32[2]{0}', space=sflag, size = 0x8, scoped, tag = 'scoped memory for tpu_custom_call.1']
    #allocation6 [shape = 'u8[65536]{0}', space=vmem, size = 0x10000, scoped, tag = 'input window, operand 3, single buffered']
    #allocation7 [shape = 's32[1]{0}', space=sflag, size = 0x4, scoped, tag = 'scoped memory for tpu_custom_call.1']
    #allocation8 [shape = 'u8[32768]{0}', space=vmem, size = 0x8000, scoped, tag = 'output window, operand 0']
    %10 = vsyncpa [#allocation4], 0
    %11 = vsyncpa [#allocation7], 0
    %12 = vsyncpa [#allocation5], 0
    %s13 = scalar_lea.sflag [#allocation5], 1
    %14 = vsyncpa %s13, 0
    loop: start=0, step=1, limit=4
    $region2: #{tpu_custom_call.1} parent=1 // loop_pre_header
      _
    $region3: #{tpu_custom_call.1} parent=1 // loop_header
      %s16 = sphi 0, %s20
      %p17 = scmp.ge.s32.totalorder %s16, 4
      %s26 = sphi 0, %s28
      %s29 = sphi 0, %s26
      %s30 = sphi 0, %s29
      %s46 = sphi 0, %s30
      %s50 = sphi 0, %s50
      %s52 = sphi 0, %s50
      %s53 = sphi 0, %s52
      %s67 = sphi 0, %s53
      %s71 = sphi 0, %s71
      %s73 = sphi 0, %s71
      %s74 = sphi 0, %s73
      %s88 = sphi 0, %s74
      %s92 = sphi 0, %s92
      %s94 = sphi 0, %s92
      %s95 = sphi 0, %s94
      %s109 = sphi 0, %s95
      %s113 = sphi 0, %s113
      %s115 = sphi 0, %s113
      %s116 = sphi 0, %s115
      %s130 = sphi 0, %s116
      %s136 = sphi 0, %s138
      %s139 = sphi 0, %s136
      %s140 = sphi 0, %s139
      %s156 = sphi 0, %s140
    $region4: #{tpu_custom_call.1} parent=1 // loop_header_branch
      %19 = sbr.rel (%p17) target = $region8
    $region5: #{tpu_custom_call.1} parent=1 // loop_body
      %s21 = ssub.s32 %s16, 1
      %s22 = ssub.s32 %s16, 2
      %s23 = sadd.s32 %s16, 1
      %s24 = ssub.s32 %s16, %s23
      %p25 = scmp.eq.s32.totalorder %s24, 0
      %s27 = sadd.s32 %s26, 1
      %s28 = scalar_select %p25, %s26, %s27
      %p31 = pneg %p25
      %p32 = scmp.eq.s32.totalorder %s16, 1
      %p33 = por %p31, %p32
      %p34 = scmp.ne.s32.totalorder %s26, %s29
      %p35 = scmp.eq.s32.totalorder %s16, 0
      %p36 = por %p34, %p35
      %p37 = scmp.ne.s32.totalorder %s26, %s29
      %p38 = scmp.eq.s32.totalorder %s21, 1
      %p39 = por %p37, %p38
      %p40 = scmp.ne.s32.totalorder %s29, %s30
      %p41 = scmp.eq.s32.totalorder %s21, 0
      %p42 = por %p40, %p41
      %p43 = scmp.ne.s32.totalorder %s29, %s30
      %p44 = scmp.eq.s32.totalorder %s22, 1
      %p45 = por %p43, %p44
      %p47 = scmp.ne.s32.totalorder %s30, %s46
      %p48 = scmp.eq.s32.totalorder %s22, 0
      %p49 = por %p47, %p48
      %s51 = sadd.s32 %s50, 1
      %p54 = scmp.eq.s32.totalorder %s16, 1
      %p55 = scmp.ne.s32.totalorder %s50, %s52
      %p56 = scmp.eq.s32.totalorder %s16, 0
      %p57 = por %p55, %p56
      %p58 = scmp.ne.s32.totalorder %s50, %s52
      %p59 = scmp.eq.s32.totalorder %s21, 1
      %p60 = por %p58, %p59
      %p61 = scmp.ne.s32.totalorder %s52, %s53
      %p62 = scmp.eq.s32.totalorder %s21, 0
      %p63 = por %p61, %p62
      %p64 = scmp.ne.s32.totalorder %s52, %s53
      %p65 = scmp.eq.s32.totalorder %s22, 1
      %p66 = por %p64, %p65
      %p68 = scmp.ne.s32.totalorder %s53, %s67
      %p69 = scmp.eq.s32.totalorder %s22, 0
      %p70 = por %p68, %p69
      %s72 = sadd.s32 %s71, 1
      %p75 = scmp.eq.s32.totalorder %s16, 1
      %p76 = scmp.ne.s32.totalorder %s71, %s73
      %p77 = scmp.eq.s32.totalorder %s16, 0
      %p78 = por %p76, %p77
      %p79 = scmp.ne.s32.totalorder %s71, %s73
      %p80 = scmp.eq.s32.totalorder %s21, 1
      %p81 = por %p79, %p80
      %p82 = scmp.ne.s32.totalorder %s73, %s74
      %p83 = scmp.eq.s32.totalorder %s21, 0
      %p84 = por %p82, %p83
      %p85 = scmp.ne.s32.totalorder %s73, %s74
      %p86 = scmp.eq.s32.totalorder %s22, 1
      %p87 = por %p85, %p86
      %p89 = scmp.ne.s32.totalorder %s74, %s88
      %p90 = scmp.eq.s32.totalorder %s22, 0
      %p91 = por %p89, %p90
      %s93 = sadd.s32 %s92, 1
      %p96 = scmp.eq.s32.totalorder %s16, 1
      %p97 = scmp.ne.s32.totalorder %s92, %s94
      %p98 = scmp.eq.s32.totalorder %s16, 0
      %p99 = por %p97, %p98
      %p100 = scmp.ne.s32.totalorder %s92, %s94
      %p101 = scmp.eq.s32.totalorder %s21, 1
      %p102 = por %p100, %p101
      %p103 = scmp.ne.s32.totalorder %s94, %s95
      %p104 = scmp.eq.s32.totalorder %s21, 0
      %p105 = por %p103, %p104
      %p106 = scmp.ne.s32.totalorder %s94, %s95
      %p107 = scmp.eq.s32.totalorder %s22, 1
      %p108 = por %p106, %p107
      %p110 = scmp.ne.s32.totalorder %s95, %s109
      %p111 = scmp.eq.s32.totalorder %s22, 0
      %p112 = por %p110, %p111
      %s114 = sadd.s32 %s113, 1
      %p117 = scmp.eq.s32.totalorder %s16, 1
      %p118 = scmp.ne.s32.totalorder %s113, %s115
      %p119 = scmp.eq.s32.totalorder %s16, 0
      %p120 = por %p118, %p119
      %p121 = scmp.ne.s32.totalorder %s113, %s115
      %p122 = scmp.eq.s32.totalorder %s21, 1
      %p123 = por %p121, %p122
      %p124 = scmp.ne.s32.totalorder %s115, %s116
      %p125 = scmp.eq.s32.totalorder %s21, 0
      %p126 = por %p124, %p125
      %p127 = scmp.ne.s32.totalorder %s115, %s116
      %p128 = scmp.eq.s32.totalorder %s22, 1
      %p129 = por %p127, %p128
      %p131 = scmp.ne.s32.totalorder %s116, %s130
      %p132 = scmp.eq.s32.totalorder %s22, 0
      %p133 = por %p131, %p132
      %s134 = ssub.s32 %s16, %s23
      %p135 = scmp.eq.s32.totalorder %s134, 0
      %s137 = sadd.s32 %s136, 1
      %s138 = scalar_select %p135, %s136, %s137
      %p141 = pneg %p135
      %p142 = scmp.eq.s32.totalorder %s16, 1
      %p143 = por %p141, %p142
      %p144 = scmp.ne.s32.totalorder %s136, %s139
      %p145 = scmp.eq.s32.totalorder %s16, 0
      %p146 = por %p144, %p145
      %p147 = scmp.ne.s32.totalorder %s136, %s139
      %p148 = scmp.eq.s32.totalorder %s21, 1
      %p149 = por %p147, %p148
      %p150 = scmp.ne.s32.totalorder %s139, %s140
      %p151 = scmp.eq.s32.totalorder %s21, 0
      %p152 = por %p150, %p151
      %p153 = scmp.ne.s32.totalorder %s139, %s140
      %p154 = scmp.eq.s32.totalorder %s22, 1
      %p155 = por %p153, %p154
      %p157 = scmp.ne.s32.totalorder %s140, %s156
      %p158 = scmp.eq.s32.totalorder %s22, 0
      %p159 = por %p157, %p158
      %p160 = scmp.le.s32.totalorder 1, %s16
      %p161 = scmp.lt.s32.totalorder %s16, 3
      %p162 = pnand %p160, %p161
      %p163 = pneg %p162
      // Predicated region
      $region9: #{tpu_custom_call.1} parent=5 // pred_check
        _
      $region10: #{tpu_custom_call.1} parent=5 // pred_check_branch
        %165 = sbr.rel (%p162) target = $region12
      $region11: #{tpu_custom_call.1} parent=5 // pred_region
        %s166 = ssub.s32 %s16, 1
        // Predicated region
        $region13: #{tpu_custom_call.1} parent=11 // pred_check
          %p167 = pneg %p63
        $region14: #{tpu_custom_call.1} parent=11 // pred_check_branch
          %169 = sbr.rel (%p167) target = $region16
        $region15: #{tpu_custom_call.1} parent=11 // pred_region
          %s171 = ssub.s32 12288, 12288
          %172 = vsyncadd [#allocation4], %s171
          %s173 = sshll.u32 [#allocation3], 4
          %s174 = int_to_ptr.vmem [resolvable:$true] %s173
          %179 = dma.hbm_to_vmem [thread:$0]  %s1, 12288, %s174, [#allocation4], 128, 128, 8
        $region16: #{tpu_custom_call.1} parent=11 // pred_fallthru
          _
        // Predicated region
        $region17: #{tpu_custom_call.1} parent=11 // pred_check
          %p180 = pneg %p84
        $region18: #{tpu_custom_call.1} parent=11 // pred_check_branch
          %182 = sbr.rel (%p180) target = $region20
        $region19: #{tpu_custom_call.1} parent=11 // pred_region
          _
        $region20: #{tpu_custom_call.1} parent=11 // pred_fallthru
          _
        // Predicated region
        $region21: #{tpu_custom_call.1} parent=11 // pred_check
          %p183 = pneg %p105
        $region22: #{tpu_custom_call.1} parent=11 // pred_check_branch
          %185 = sbr.rel (%p183) target = $region24
        $region23: #{tpu_custom_call.1} parent=11 // pred_region
          %s187 = ssub.s32 2048, 2048
          %188 = vsyncadd [#allocation7], %s187
          %s189 = sshll.u32 [#allocation6], 4
          %s190 = int_to_ptr.vmem [resolvable:$true] %s189
          %195 = dma.hbm_to_vmem [thread:$0]  %s3, 2048, %s190, [#allocation7], 128, 128, 8
        $region24: #{tpu_custom_call.1} parent=11 // pred_fallthru
          _
        // Predicated region
        $region25: #{tpu_custom_call.1} parent=11 // pred_check
          %p196 = pneg %p126
        $region26: #{tpu_custom_call.1} parent=11 // pred_check_branch
          %198 = sbr.rel (%p196) target = $region28
        $region27: #{tpu_custom_call.1} parent=11 // pred_region
          _
        $region28: #{tpu_custom_call.1} parent=11 // pred_fallthru
          _
      $region12: #{tpu_custom_call.1} parent=5 // pred_fallthru
        _
      %p199 = scmp.lt.s32.totalorder %s16, 2
      // Predicated region
      $region29: #{tpu_custom_call.1} parent=5 // pred_check
        %p200 = pneg %p199
      $region30: #{tpu_custom_call.1} parent=5 // pred_check_branch
        %202 = sbr.rel (%p200) target = $region32
      $region31: #{tpu_custom_call.1} parent=5 // pred_region
        // Predicated region
        $region33: #{tpu_custom_call.1} parent=31 // pred_check
          %p203 = pneg %p36
        $region34: #{tpu_custom_call.1} parent=31 // pred_check_branch
          %205 = sbr.rel (%p203) target = $region36
        $region35: #{tpu_custom_call.1} parent=31 // pred_region
          %s206 = smul.u32 4, %s16
          %p207 = scmp.lt.s32.totalorder %s206, 7
          %s208 = scalar_select %p207, %s206, 7
          %s209 = smul.addr %s208, 8
          %s210 = scalar_lea.vmem %s0, %s209
          %s211 = smul.u32 4, %s16
        $region36: #{tpu_custom_call.1} parent=31 // pred_fallthru
          _
      $region32: #{tpu_custom_call.1} parent=5 // pred_fallthru
        _
      %p212 = scmp.le.s32.totalorder 1, %s16
      %p213 = scmp.lt.s32.totalorder %s16, 3
      %p214 = pnand %p212, %p213
      %p215 = pneg %p214
      // Predicated region
      $region37: #{tpu_custom_call.1} parent=5 // pred_check
        _
      $region38: #{tpu_custom_call.1} parent=5 // pred_check_branch
        %217 = sbr.rel (%p214) target = $region40
      $region39: #{tpu_custom_call.1} parent=5 // pred_region
        %s218 = ssub.s32 %s16, 1
        // Predicated region
        $region41: #{tpu_custom_call.1} parent=39 // pred_check
          %p219 = pneg %p63
        $region42: #{tpu_custom_call.1} parent=39 // pred_check_branch
          %221 = sbr.rel (%p219) target = $region44
        $region43: #{tpu_custom_call.1} parent=39 // pred_region
          %222 = dma.done [#allocation4], 12288
        $region44: #{tpu_custom_call.1} parent=39 // pred_fallthru
          _
        // Predicated region
        $region45: #{tpu_custom_call.1} parent=39 // pred_check
          %p223 = pneg %p105
        $region46: #{tpu_custom_call.1} parent=39 // pred_check_branch
          %225 = sbr.rel (%p223) target = $region48
        $region47: #{tpu_custom_call.1} parent=39 // pred_region
          %226 = dma.done [#allocation7], 2048
        $region48: #{tpu_custom_call.1} parent=39 // pred_fallthru
          _
        %s227 = smul.u32 4, %s21
        %p228 = scmp.lt.s32.totalorder %s227, 7
        %s229 = scalar_select %p228, %s227, 7
        %s230 = smul.addr %s229, 8
        %s231 = scalar_lea.vmem %s0, %s230
        %p232 = pneg %p42
        %p233 = pneg %p39
        %p234 = pneg %p63
        %p235 = pneg %p60
        %p236 = pneg %p84
        %p237 = pneg %p81
        %p238 = pneg %p105
        %p239 = pneg %p102
        %p240 = pneg %p126
        %p241 = pneg %p123
        %p242 = pneg %p152
        %p243 = pneg %p149
        %s244 = sand.u32 %s139, 1
        %s245 = scalar_lea.sflag [#allocation5], %s244
        %s246 = sand.u32 %s139, 1
        %s247 = smul.addr %s246, 32
        %s248 = scalar_lea.vmem [#allocation8], %s247
        %s249 = smul.u32 4, %s21
        %p250 = scmp.lt.s32.totalorder %s249, 7
        %s251 = scalar_select %p250, %s249, 7
        %s252 = smul.addr %s251, 8
        %s253 = scalar_lea.vmem %s0, %s252
        %s254 = smul.u32 4, %s21
        %s255 = smul.u32 4, %s21
        %v257 = vld [vmem:[%s253] sm:$0xff]
        %v258 = vld [vmem:[%s253 + $0x8] sm:$0xff]
        %v259 = vld [vmem:[%s253 + $0x10] sm:$0xff]
        %v260 = vld [vmem:[%s253 + $0x18] sm:$0xff]
        %v261 = vlaneseq
        %v262 = vand.u32 %v261, 127
        %263 = vset.pattern.permute.xlu0 0
        %264 = vperm.xlu0 %263, %v257
        %v265 = vpop.permute.xlu0 %264
        %266 = vset.pattern.permute.xlu0 0
        %267 = vperm.xlu0 %266, %v258
        %v268 = vpop.permute.xlu0 %267
        %269 = vset.pattern.permute.xlu0 0
        %270 = vperm.xlu0 %269, %v259
        %v271 = vpop.permute.xlu0 %270
        %272 = vset.pattern.permute.xlu0 0
        %273 = vperm.xlu0 %272, %v260
        %v274 = vpop.permute.xlu0 %273
        %vm275 = vcmp.eq.s32.totalorder %v265, %v262
        %vm276 = vcmp.eq.s32.totalorder %v268, %v262
        %vm277 = vcmp.eq.s32.totalorder %v271, %v262
        %vm278 = vcmp.eq.s32.totalorder %v274, %v262
        %v279 = vsel %vm275, 1, 0
        %v280 = vsel %vm276, 1, 0
        %v281 = vsel %vm277, 1, 0
        %v282 = vsel %vm278, 1, 0
        %v283 = vcvt.s32.f32 %v279
        %v284 = vcvt.s32.f32 %v280
        %v285 = vcvt.s32.f32 %v281
        %v286 = vcvt.s32.f32 %v282
        %v287 = vpack.c.bf16 %v284, %v283
        %v288 = vpack.c.bf16 %v286, %v285
        %289 = vst [vmem:[#allocation2] sm:$0xff] %v287
        %290 = vst [vmem:[#allocation2 + $0x80] sm:$0xff] %v288
        %291 = vset.pattern.permute.xlu0 1
        %292 = vperm.xlu0 %291, %v257
        %v293 = vpop.permute.xlu0 %292
        %294 = vset.pattern.permute.xlu0 1
        %295 = vperm.xlu0 %294, %v258
        %v296 = vpop.permute.xlu0 %295
        %297 = vset.pattern.permute.xlu0 1
        %298 = vperm.xlu0 %297, %v259
        %v299 = vpop.permute.xlu0 %298
        %300 = vset.pattern.permute.xlu0 1
        %301 = vperm.xlu0 %300, %v260
        %v302 = vpop.permute.xlu0 %301
        %vm303 = vcmp.eq.s32.totalorder %v293, %v262
        %vm304 = vcmp.eq.s32.totalorder %v296, %v262
        %vm305 = vcmp.eq.s32.totalorder %v299, %v262
        %vm306 = vcmp.eq.s32.totalorder %v302, %v262
        %v307 = vsel %vm303, 1, 0
        %v308 = vsel %vm304, 1, 0
        %v309 = vsel %vm305, 1, 0
        %v310 = vsel %vm306, 1, 0
        %v311 = vcvt.s32.f32 %v307
        %v312 = vcvt.s32.f32 %v308
        %v313 = vcvt.s32.f32 %v309
        %v314 = vcvt.s32.f32 %v310
        %v315 = vpack.c.bf16 %v312, %v311
        %v316 = vpack.c.bf16 %v314, %v313
        %317 = vst [vmem:[#allocation2 + $0x8] sm:$0xff] %v315
        %318 = vst [vmem:[#allocation2 + $0x88] sm:$0xff] %v316
        %319 = vset.pattern.permute.xlu0 2
        %320 = vperm.xlu0 %319, %v257
        %v321 = vpop.permute.xlu0 %320
        %322 = vset.pattern.permute.xlu0 2
        %323 = vperm.xlu0 %322, %v258
        %v324 = vpop.permute.xlu0 %323
        %325 = vset.pattern.permute.xlu0 2
        %326 = vperm.xlu0 %325, %v259
        %v327 = vpop.permute.xlu0 %326
        %328 = vset.pattern.permute.xlu0 2
        %329 = vperm.xlu0 %328, %v260
        %v330 = vpop.permute.xlu0 %329
        %vm331 = vcmp.eq.s32.totalorder %v321, %v262
        %vm332 = vcmp.eq.s32.totalorder %v324, %v262
        %vm333 = vcmp.eq.s32.totalorder %v327, %v262
        %vm334 = vcmp.eq.s32.totalorder %v330, %v262
        %v335 = vsel %vm331, 1, 0
        %v336 = vsel %vm332, 1, 0
        %v337 = vsel %vm333, 1, 0
        %v338 = vsel %vm334, 1, 0
        %v339 = vcvt.s32.f32 %v335
        %v340 = vcvt.s32.f32 %v336
        %v341 = vcvt.s32.f32 %v337
        %v342 = vcvt.s32.f32 %v338
        %v343 = vpack.c.bf16 %v340, %v339
        %v344 = vpack.c.bf16 %v342, %v341
        %345 = vst [vmem:[#allocation2 + $0x10] sm:$0xff] %v343
        %346 = vst [vmem:[#allocation2 + $0x90] sm:$0xff] %v344
        %347 = vset.pattern.permute.xlu0 3
        %348 = vperm.xlu0 %347, %v257
        %v349 = vpop.permute.xlu0 %348
        %350 = vset.pattern.permute.xlu0 3
        %351 = vperm.xlu0 %350, %v258
        %v352 = vpop.permute.xlu0 %351
        %353 = vset.pattern.permute.xlu0 3
        %354 = vperm.xlu0 %353, %v259
        %v355 = vpop.permute.xlu0 %354
        %356 = vset.pattern.permute.xlu0 3
        %357 = vperm.xlu0 %356, %v260
        %v358 = vpop.permute.xlu0 %357
        %vm359 = vcmp.eq.s32.totalorder %v349, %v262
        %vm360 = vcmp.eq.s32.totalorder %v352, %v262
        %vm361 = vcmp.eq.s32.totalorder %v355, %v262
        %vm362 = vcmp.eq.s32.totalorder %v358, %v262
        %v363 = vsel %vm359, 1, 0
        %v364 = vsel %vm360, 1, 0
        %v365 = vsel %vm361, 1, 0
        %v366 = vsel %vm362, 1, 0
        %v367 = vcvt.s32.f32 %v363
        %v368 = vcvt.s32.f32 %v364
        %v369 = vcvt.s32.f32 %v365
        %v370 = vcvt.s32.f32 %v366
        %v371 = vpack.c.bf16 %v368, %v367
        %v372 = vpack.c.bf16 %v370, %v369
        %373 = vst [vmem:[#allocation2 + $0x18] sm:$0xff] %v371
        %374 = vst [vmem:[#allocation2 + $0x98] sm:$0xff] %v372
        %375 = vset.pattern.permute.xlu0 4
        %376 = vperm.xlu0 %375, %v257
        %v377 = vpop.permute.xlu0 %376
        %378 = vset.pattern.permute.xlu0 4
        %379 = vperm.xlu0 %378, %v258
        %v380 = vpop.permute.xlu0 %379
        %381 = vset.pattern.permute.xlu0 4
        %382 = vperm.xlu0 %381, %v259
        %v383 = vpop.permute.xlu0 %382
        %384 = vset.pattern.permute.xlu0 4
        %385 = vperm.xlu0 %384, %v260
        %v386 = vpop.permute.xlu0 %385
        %vm387 = vcmp.eq.s32.totalorder %v377, %v262
        %vm388 = vcmp.eq.s32.totalorder %v380, %v262
        %vm389 = vcmp.eq.s32.totalorder %v383, %v262
        %vm390 = vcmp.eq.s32.totalorder %v386, %v262
        %v391 = vsel %vm387, 1, 0
        %v392 = vsel %vm388, 1, 0
        %v393 = vsel %vm389, 1, 0
        %v394 = vsel %vm390, 1, 0
        %v395 = vcvt.s32.f32 %v391
        %v396 = vcvt.s32.f32 %v392
        %v397 = vcvt.s32.f32 %v393
        %v398 = vcvt.s32.f32 %v394
        %v399 = vpack.c.bf16 %v396, %v395
        %v400 = vpack.c.bf16 %v398, %v397
        %401 = vst [vmem:[#allocation2 + $0x20] sm:$0xff] %v399
        %402 = vst [vmem:[#allocation2 + $0xa0] sm:$0xff] %v400
        %403 = vset.pattern.permute.xlu0 5
        %404 = vperm.xlu0 %403, %v257
        %v405 = vpop.permute.xlu0 %404
        %406 = vset.pattern.permute.xlu0 5
        %407 = vperm.xlu0 %406, %v258
        %v408 = vpop.permute.xlu0 %407
        %409 = vset.pattern.permute.xlu0 5
        %410 = vperm.xlu0 %409, %v259
        %v411 = vpop.permute.xlu0 %410
        %412 = vset.pattern.permute.xlu0 5
        %413 = vperm.xlu0 %412, %v260
        %v414 = vpop.permute.xlu0 %413
        %vm415 = vcmp.eq.s32.totalorder %v405, %v262
        %vm416 = vcmp.eq.s32.totalorder %v408, %v262
        %vm417 = vcmp.eq.s32.totalorder %v411, %v262
        %vm418 = vcmp.eq.s32.totalorder %v414, %v262
        %v419 = vsel %vm415, 1, 0
        %v420 = vsel %vm416, 1, 0
        %v421 = vsel %vm417, 1, 0
        %v422 = vsel %vm418, 1, 0
        %v423 = vcvt.s32.f32 %v419
        %v424 = vcvt.s32.f32 %v420
        %v425 = vcvt.s32.f32 %v421
        %v426 = vcvt.s32.f32 %v422
        %v427 = vpack.c.bf16 %v424, %v423
        %v428 = vpack.c.bf16 %v426, %v425
        %429 = vst [vmem:[#allocation2 + $0x28] sm:$0xff] %v427
        %430 = vst [vmem:[#allocation2 + $0xa8] sm:$0xff] %v428
        %431 = vset.pattern.permute.xlu0 6
        %432 = vperm.xlu0 %431, %v257
        %v433 = vpop.permute.xlu0 %432
        %434 = vset.pattern.permute.xlu0 6
        %435 = vperm.xlu0 %434, %v258
        %v436 = vpop.permute.xlu0 %435
        %437 = vset.pattern.permute.xlu0 6
        %438 = vperm.xlu0 %437, %v259
        %v439 = vpop.permute.xlu0 %438
        %440 = vset.pattern.permute.xlu0 6
        %441 = vperm.xlu0 %440, %v260
        %v442 = vpop.permute.xlu0 %441
        %vm443 = vcmp.eq.s32.totalorder %v433, %v262
        %vm444 = vcmp.eq.s32.totalorder %v436, %v262
        %vm445 = vcmp.eq.s32.totalorder %v439, %v262
        %vm446 = vcmp.eq.s32.totalorder %v442, %v262
        %v447 = vsel %vm443, 1, 0
        %v448 = vsel %vm444, 1, 0
        %v449 = vsel %vm445, 1, 0
        %v450 = vsel %vm446, 1, 0
        %v451 = vcvt.s32.f32 %v447
        %v452 = vcvt.s32.f32 %v448
        %v453 = vcvt.s32.f32 %v449
        %v454 = vcvt.s32.f32 %v450
        %v455 = vpack.c.bf16 %v452, %v451
        %v456 = vpack.c.bf16 %v454, %v453
        %457 = vst [vmem:[#allocation2 + $0x30] sm:$0xff] %v455
        %458 = vst [vmem:[#allocation2 + $0xb0] sm:$0xff] %v456
        %459 = vset.pattern.permute.xlu0 7
        %460 = vperm.xlu0 %459, %v257
        %v461 = vpop.permute.xlu0 %460
        %462 = vset.pattern.permute.xlu0 7
        %463 = vperm.xlu0 %462, %v258
        %v464 = vpop.permute.xlu0 %463
        %465 = vset.pattern.permute.xlu0 7
        %466 = vperm.xlu0 %465, %v259
        %v467 = vpop.permute.xlu0 %466
        %468 = vset.pattern.permute.xlu0 7
        %469 = vperm.xlu0 %468, %v260
        %v470 = vpop.permute.xlu0 %469
        %vm471 = vcmp.eq.s32.totalorder %v461, %v262
        %vm472 = vcmp.eq.s32.totalorder %v464, %v262
        %vm473 = vcmp.eq.s32.totalorder %v467, %v262
        %vm474 = vcmp.eq.s32.totalorder %v470, %v262
        %v475 = vsel %vm471, 1, 0
        %v476 = vsel %vm472, 1, 0
        %v477 = vsel %vm473, 1, 0
        %v478 = vsel %vm474, 1, 0
        %v479 = vcvt.s32.f32 %v475
        %v480 = vcvt.s32.f32 %v476
        %v481 = vcvt.s32.f32 %v477
        %v482 = vcvt.s32.f32 %v478
        %v483 = vpack.c.bf16 %v480, %v479
        %v484 = vpack.c.bf16 %v482, %v481
        %485 = vst [vmem:[#allocation2 + $0x38] sm:$0xff] %v483
        %486 = vst [vmem:[#allocation2 + $0xb8] sm:$0xff] %v484
        %487 = vset.pattern.permute.xlu0 8
        %488 = vperm.xlu0 %487, %v257
        %v489 = vpop.permute.xlu0 %488
        %490 = vset.pattern.permute.xlu0 8
        %491 = vperm.xlu0 %490, %v258
        %v492 = vpop.permute.xlu0 %491
        %493 = vset.pattern.permute.xlu0 8
        %494 = vperm.xlu0 %493, %v259
        %v495 = vpop.permute.xlu0 %494
        %496 = vset.pattern.permute.xlu0 8
        %497 = vperm.xlu0 %496, %v260
        %v498 = vpop.permute.xlu0 %497
        %vm499 = vcmp.eq.s32.totalorder %v489, %v262
        %vm500 = vcmp.eq.s32.totalorder %v492, %v262
        %vm501 = vcmp.eq.s32.totalorder %v495, %v262
        %vm502 = vcmp.eq.s32.totalorder %v498, %v262
        %v503 = vsel %vm499, 1, 0
        %v504 = vsel %vm500, 1, 0
        %v505 = vsel %vm501, 1, 0
        %v506 = vsel %vm502, 1, 0
        %v507 = vcvt.s32.f32 %v503
        %v508 = vcvt.s32.f32 %v504
        %v509 = vcvt.s32.f32 %v505
        %v510 = vcvt.s32.f32 %v506
        %v511 = vpack.c.bf16 %v508, %v507
        %v512 = vpack.c.bf16 %v510, %v509
        %513 = vst [vmem:[#allocation2 + $0x40] sm:$0xff] %v511
        %514 = vst [vmem:[#allocation2 + $0xc0] sm:$0xff] %v512
        %515 = vset.pattern.permute.xlu0 9
        %516 = vperm.xlu0 %515, %v257
        %v517 = vpop.permute.xlu0 %516
        %518 = vset.pattern.permute.xlu0 9
        %519 = vperm.xlu0 %518, %v258
        %v520 = vpop.permute.xlu0 %519
        %521 = vset.pattern.permute.xlu0 9
        %522 = vperm.xlu0 %521, %v259
        %v523 = vpop.permute.xlu0 %522
        %524 = vset.pattern.permute.xlu0 9
        %525 = vperm.xlu0 %524, %v260
        %v526 = vpop.permute.xlu0 %525
        %vm527 = vcmp.eq.s32.totalorder %v517, %v262
        %vm528 = vcmp.eq.s32.totalorder %v520, %v262
        %vm529 = vcmp.eq.s32.totalorder %v523, %v262
        %vm530 = vcmp.eq.s32.totalorder %v526, %v262
        %v531 = vsel %vm527, 1, 0
        %v532 = vsel %vm528, 1, 0
        %v533 = vsel %vm529, 1, 0
        %v534 = vsel %vm530, 1, 0
        %v535 = vcvt.s32.f32 %v531
        %v536 = vcvt.s32.f32 %v532
        %v537 = vcvt.s32.f32 %v533
        %v538 = vcvt.s32.f32 %v534
        %v539 = vpack.c.bf16 %v536, %v535
        %v540 = vpack.c.bf16 %v538, %v537
        %541 = vst [vmem:[#allocation2 + $0x48] sm:$0xff] %v539
        %542 = vst [vmem:[#allocation2 + $0xc8] sm:$0xff] %v540
        %543 = vset.pattern.permute.xlu0 10
        %544 = vperm.xlu0 %543, %v257
        %v545 = vpop.permute.xlu0 %544
        %546 = vset.pattern.permute.xlu0 10
        %547 = vperm.xlu0 %546, %v258
        %v548 = vpop.permute.xlu0 %547
        %549 = vset.pattern.permute.xlu0 10
        %550 = vperm.xlu0 %549, %v259
        %v551 = vpop.permute.xlu0 %550
        %552 = vset.pattern.permute.xlu0 10
        %553 = vperm.xlu0 %552, %v260
        %v554 = vpop.permute.xlu0 %553
        %vm555 = vcmp.eq.s32.totalorder %v545, %v262
        %vm556 = vcmp.eq.s32.totalorder %v548, %v262
        %vm557 = vcmp.eq.s32.totalorder %v551, %v262
        %vm558 = vcmp.eq.s32.totalorder %v554, %v262
        %v559 = vsel %vm555, 1, 0
        %v560 = vsel %vm556, 1, 0
        %v561 = vsel %vm557, 1, 0
        %v562 = vsel %vm558, 1, 0
        %v563 = vcvt.s32.f32 %v559
        %v564 = vcvt.s32.f32 %v560
        %v565 = vcvt.s32.f32 %v561
        %v566 = vcvt.s32.f32 %v562
        %v567 = vpack.c.bf16 %v564, %v563
        %v568 = vpack.c.bf16 %v566, %v565
        %569 = vst [vmem:[#allocation2 + $0x50] sm:$0xff] %v567
        %570 = vst [vmem:[#allocation2 + $0xd0] sm:$0xff] %v568
        %571 = vset.pattern.permute.xlu0 11
        %572 = vperm.xlu0 %571, %v257
        %v573 = vpop.permute.xlu0 %572
        %574 = vset.pattern.permute.xlu0 11
        %575 = vperm.xlu0 %574, %v258
        %v576 = vpop.permute.xlu0 %575
        %577 = vset.pattern.permute.xlu0 11
        %578 = vperm.xlu0 %577, %v259
        %v579 = vpop.permute.xlu0 %578
        %580 = vset.pattern.permute.xlu0 11
        %581 = vperm.xlu0 %580, %v260
        %v582 = vpop.permute.xlu0 %581
        %vm583 = vcmp.eq.s32.totalorder %v573, %v262
        %vm584 = vcmp.eq.s32.totalorder %v576, %v262
        %vm585 = vcmp.eq.s32.totalorder %v579, %v262
        %vm586 = vcmp.eq.s32.totalorder %v582, %v262
        %v587 = vsel %vm583, 1, 0
        %v588 = vsel %vm584, 1, 0
        %v589 = vsel %vm585, 1, 0
        %v590 = vsel %vm586, 1, 0
        %v591 = vcvt.s32.f32 %v587
        %v592 = vcvt.s32.f32 %v588
        %v593 = vcvt.s32.f32 %v589
        %v594 = vcvt.s32.f32 %v590
        %v595 = vpack.c.bf16 %v592, %v591
        %v596 = vpack.c.bf16 %v594, %v593
        %597 = vst [vmem:[#allocation2 + $0x58] sm:$0xff] %v595
        %598 = vst [vmem:[#allocation2 + $0xd8] sm:$0xff] %v596
        %599 = vset.pattern.permute.xlu0 12
        %600 = vperm.xlu0 %599, %v257
        %v601 = vpop.permute.xlu0 %600
        %602 = vset.pattern.permute.xlu0 12
        %603 = vperm.xlu0 %602, %v258
        %v604 = vpop.permute.xlu0 %603
        %605 = vset.pattern.permute.xlu0 12
        %606 = vperm.xlu0 %605, %v259
        %v607 = vpop.permute.xlu0 %606
        %608 = vset.pattern.permute.xlu0 12
        %609 = vperm.xlu0 %608, %v260
        %v610 = vpop.permute.xlu0 %609
        %vm611 = vcmp.eq.s32.totalorder %v601, %v262
        %vm612 = vcmp.eq.s32.totalorder %v604, %v262
        %vm613 = vcmp.eq.s32.totalorder %v607, %v262
        %vm614 = vcmp.eq.s32.totalorder %v610, %v262
        %v615 = vsel %vm611, 1, 0
        %v616 = vsel %vm612, 1, 0
        %v617 = vsel %vm613, 1, 0
        %v618 = vsel %vm614, 1, 0
        %v619 = vcvt.s32.f32 %v615
        %v620 = vcvt.s32.f32 %v616
        %v621 = vcvt.s32.f32 %v617
        %v622 = vcvt.s32.f32 %v618
        %v623 = vpack.c.bf16 %v620, %v619
        %v624 = vpack.c.bf16 %v622, %v621
        %625 = vst [vmem:[#allocation2 + $0x60] sm:$0xff] %v623
        %626 = vst [vmem:[#allocation2 + $0xe0] sm:$0xff] %v624
        %627 = vset.pattern.permute.xlu0 13
        %628 = vperm.xlu0 %627, %v257
        %v629 = vpop.permute.xlu0 %628
        %630 = vset.pattern.permute.xlu0 13
        %631 = vperm.xlu0 %630, %v258
        %v632 = vpop.permute.xlu0 %631
        %633 = vset.pattern.permute.xlu0 13
        %634 = vperm.xlu0 %633, %v259
        %v635 = vpop.permute.xlu0 %634
        %636 = vset.pattern.permute.xlu0 13
        %637 = vperm.xlu0 %636, %v260
        %v638 = vpop.permute.xlu0 %637
        %vm639 = vcmp.eq.s32.totalorder %v629, %v262
        %vm640 = vcmp.eq.s32.totalorder %v632, %v262
        %vm641 = vcmp.eq.s32.totalorder %v635, %v262
        %vm642 = vcmp.eq.s32.totalorder %v638, %v262
        %v643 = vsel %vm639, 1, 0
        %v644 = vsel %vm640, 1, 0
        %v645 = vsel %vm641, 1, 0
        %v646 = vsel %vm642, 1, 0
        %v647 = vcvt.s32.f32 %v643
        %v648 = vcvt.s32.f32 %v644
        %v649 = vcvt.s32.f32 %v645
        %v650 = vcvt.s32.f32 %v646
        %v651 = vpack.c.bf16 %v648, %v647
        %v652 = vpack.c.bf16 %v650, %v649
        %653 = vst [vmem:[#allocation2 + $0x68] sm:$0xff] %v651
        %654 = vst [vmem:[#allocation2 + $0xe8] sm:$0xff] %v652
        %655 = vset.pattern.permute.xlu0 14
        %656 = vperm.xlu0 %655, %v257
        %v657 = vpop.permute.xlu0 %656
        %658 = vset.pattern.permute.xlu0 14
        %659 = vperm.xlu0 %658, %v258
        %v660 = vpop.permute.xlu0 %659
        %661 = vset.pattern.permute.xlu0 14
        %662 = vperm.xlu0 %661, %v259
        %v663 = vpop.permute.xlu0 %662
        %664 = vset.pattern.permute.xlu0 14
        %665 = vperm.xlu0 %664, %v260
        %v666 = vpop.permute.xlu0 %665
        %vm667 = vcmp.eq.s32.totalorder %v657, %v262
        %vm668 = vcmp.eq.s32.totalorder %v660, %v262
        %vm669 = vcmp.eq.s32.totalorder %v663, %v262
        %vm670 = vcmp.eq.s32.totalorder %v666, %v262
        %v671 = vsel %vm667, 1, 0
        %v672 = vsel %vm668, 1, 0
        %v673 = vsel %vm669, 1, 0
        %v674 = vsel %vm670, 1, 0
        %v675 = vcvt.s32.f32 %v671
        %v676 = vcvt.s32.f32 %v672
        %v677 = vcvt.s32.f32 %v673
        %v678 = vcvt.s32.f32 %v674
        %v679 = vpack.c.bf16 %v676, %v675
        %v680 = vpack.c.bf16 %v678, %v677
        %681 = vst [vmem:[#allocation2 + $0x70] sm:$0xff] %v679
        %682 = vst [vmem:[#allocation2 + $0xf0] sm:$0xff] %v680
        %683 = vset.pattern.permute.xlu0 15
        %684 = vperm.xlu0 %683, %v257
        %v685 = vpop.permute.xlu0 %684
        %686 = vset.pattern.permute.xlu0 15
        %687 = vperm.xlu0 %686, %v258
        %v688 = vpop.permute.xlu0 %687
        %689 = vset.pattern.permute.xlu0 15
        %690 = vperm.xlu0 %689, %v259
        %v691 = vpop.permute.xlu0 %690
        %692 = vset.pattern.permute.xlu0 15
        %693 = vperm.xlu0 %692, %v260
        %v694 = vpop.permute.xlu0 %693
        %vm695 = vcmp.eq.s32.totalorder %v685, %v262
        %vm696 = vcmp.eq.s32.totalorder %v688, %v262
        %vm697 = vcmp.eq.s32.totalorder %v691, %v262
        %vm698 = vcmp.eq.s32.totalorder %v694, %v262
        %v699 = vsel %vm695, 1, 0
        %v700 = vsel %vm696, 1, 0
        %v701 = vsel %vm697, 1, 0
        %v702 = vsel %vm698, 1, 0
        %v703 = vcvt.s32.f32 %v699
        %v704 = vcvt.s32.f32 %v700
        %v705 = vcvt.s32.f32 %v701
        %v706 = vcvt.s32.f32 %v702
        %v707 = vpack.c.bf16 %v704, %v703
        %v708 = vpack.c.bf16 %v706, %v705
        %709 = vst [vmem:[#allocation2 + $0x78] sm:$0xff] %v707
        %710 = vst [vmem:[#allocation2 + $0xf8] sm:$0xff] %v708
        %v711 = vld [vmem:[#allocation3] sm:$0xff]
        %v712 = vld [vmem:[#allocation3 + $0x8] sm:$0xff]
        %v713 = vld [vmem:[#allocation3 + $0x10] sm:$0xff]
        %v714 = vld [vmem:[#allocation3 + $0x18] sm:$0xff]
        %v715 = vld [vmem:[#allocation3 + $0x20] sm:$0xff]
        %v716 = vld [vmem:[#allocation3 + $0x28] sm:$0xff]
        %v717 = vld [vmem:[#allocation3 + $0x30] sm:$0xff]
        %v718 = vld [vmem:[#allocation3 + $0x38] sm:$0xff]
        %v719 = vld [vmem:[#allocation3 + $0x40] sm:$0xff]
        %v720 = vld [vmem:[#allocation3 + $0x48] sm:$0xff]
        %v721 = vld [vmem:[#allocation3 + $0x50] sm:$0xff]
        %v722 = vld [vmem:[#allocation3 + $0x58] sm:$0xff]
        %v723 = vld [vmem:[#allocation3 + $0x60] sm:$0xff]
        %v724 = vld [vmem:[#allocation3 + $0x68] sm:$0xff]
        %v725 = vld [vmem:[#allocation3 + $0x70] sm:$0xff]
        %v726 = vld [vmem:[#allocation3 + $0x78] sm:$0xff]
        %v727 = vld [vmem:[#allocation3 + $0x80] sm:$0xff]
        %v728 = vld [vmem:[#allocation3 + $0x88] sm:$0xff]
        %v729 = vld [vmem:[#allocation3 + $0x90] sm:$0xff]
        %v730 = vld [vmem:[#allocation3 + $0x98] sm:$0xff]
        %v731 = vld [vmem:[#allocation3 + $0xa0] sm:$0xff]
        %v732 = vld [vmem:[#allocation3 + $0xa8] sm:$0xff]
        %v733 = vld [vmem:[#allocation3 + $0xb0] sm:$0xff]
        %v734 = vld [vmem:[#allocation3 + $0xb8] sm:$0xff]
        %v735 = vld [vmem:[#allocation3 + $0xc0] sm:$0xff]
        %v736 = vld [vmem:[#allocation3 + $0xc8] sm:$0xff]
        %v737 = vld [vmem:[#allocation3 + $0xd0] sm:$0xff]
        %v738 = vld [vmem:[#allocation3 + $0xd8] sm:$0xff]
        %v739 = vld [vmem:[#allocation3 + $0xe0] sm:$0xff]
        %v740 = vld [vmem:[#allocation3 + $0xe8] sm:$0xff]
        %v741 = vld [vmem:[#allocation3 + $0xf0] sm:$0xff]
        %v742 = vld [vmem:[#allocation3 + $0xf8] sm:$0xff]
        %v743 = vld [vmem:[#allocation3 + $0x100] sm:$0xff]
        %v744 = vld [vmem:[#allocation3 + $0x108] sm:$0xff]
        %v745 = vld [vmem:[#allocation3 + $0x110] sm:$0xff]
        %v746 = vld [vmem:[#allocation3 + $0x118] sm:$0xff]
        %v747 = vld [vmem:[#allocation3 + $0x120] sm:$0xff]
        %v748 = vld [vmem:[#allocation3 + $0x128] sm:$0xff]
        %v749 = vld [vmem:[#allocation3 + $0x130] sm:$0xff]
        %v750 = vld [vmem:[#allocation3 + $0x138] sm:$0xff]
        %v751 = vld [vmem:[#allocation3 + $0x140] sm:$0xff]
        %v752 = vld [vmem:[#allocation3 + $0x148] sm:$0xff]
        %v753 = vld [vmem:[#allocation3 + $0x150] sm:$0xff]
        %v754 = vld [vmem:[#allocation3 + $0x158] sm:$0xff]
        %v755 = vld [vmem:[#allocation3 + $0x160] sm:$0xff]
        %v756 = vld [vmem:[#allocation3 + $0x168] sm:$0xff]
        %v757 = vld [vmem:[#allocation3 + $0x170] sm:$0xff]
        %v758 = vld [vmem:[#allocation3 + $0x178] sm:$0xff]
        %v759 = vld [vmem:[#allocation3 + $0x180] sm:$0xff]
        %v760 = vld [vmem:[#allocation3 + $0x188] sm:$0xff]
        %v761 = vld [vmem:[#allocation3 + $0x190] sm:$0xff]
        %v762 = vld [vmem:[#allocation3 + $0x198] sm:$0xff]
        %v763 = vld [vmem:[#allocation3 + $0x1a0] sm:$0xff]
        %v764 = vld [vmem:[#allocation3 + $0x1a8] sm:$0xff]
        %v765 = vld [vmem:[#allocation3 + $0x1b0] sm:$0xff]
        %v766 = vld [vmem:[#allocation3 + $0x1b8] sm:$0xff]
        %v767 = vld [vmem:[#allocation3 + $0x1c0] sm:$0xff]
        %v768 = vld [vmem:[#allocation3 + $0x1c8] sm:$0xff]
        %v769 = vld [vmem:[#allocation3 + $0x1d0] sm:$0xff]
        %v770 = vld [vmem:[#allocation3 + $0x1d8] sm:$0xff]
        %v771 = vld [vmem:[#allocation3 + $0x1e0] sm:$0xff]
        %v772 = vld [vmem:[#allocation3 + $0x1e8] sm:$0xff]
        %v773 = vld [vmem:[#allocation3 + $0x1f0] sm:$0xff]
        %v774 = vld [vmem:[#allocation3 + $0x1f8] sm:$0xff]
        %v775 = vld [vmem:[#allocation3 + $0x200] sm:$0xff]
        %v776 = vld [vmem:[#allocation3 + $0x208] sm:$0xff]
        %v777 = vld [vmem:[#allocation3 + $0x210] sm:$0xff]
        %v778 = vld [vmem:[#allocation3 + $0x218] sm:$0xff]
        %v779 = vld [vmem:[#allocation3 + $0x220] sm:$0xff]
        %v780 = vld [vmem:[#allocation3 + $0x228] sm:$0xff]
        %v781 = vld [vmem:[#allocation3 + $0x230] sm:$0xff]
        %v782 = vld [vmem:[#allocation3 + $0x238] sm:$0xff]
        %v783 = vld [vmem:[#allocation3 + $0x240] sm:$0xff]
        %v784 = vld [vmem:[#allocation3 + $0x248] sm:$0xff]
        %v785 = vld [vmem:[#allocation3 + $0x250] sm:$0xff]
        %v786 = vld [vmem:[#allocation3 + $0x258] sm:$0xff]
        %v787 = vld [vmem:[#allocation3 + $0x260] sm:$0xff]
        %v788 = vld [vmem:[#allocation3 + $0x268] sm:$0xff]
        %v789 = vld [vmem:[#allocation3 + $0x270] sm:$0xff]
        %v790 = vld [vmem:[#allocation3 + $0x278] sm:$0xff]
        %v791 = vld [vmem:[#allocation3 + $0x280] sm:$0xff]
        %v792 = vld [vmem:[#allocation3 + $0x288] sm:$0xff]
        %v793 = vld [vmem:[#allocation3 + $0x290] sm:$0xff]
        %v794 = vld [vmem:[#allocation3 + $0x298] sm:$0xff]
        %v795 = vld [vmem:[#allocation3 + $0x2a0] sm:$0xff]
        %v796 = vld [vmem:[#allocation3 + $0x2a8] sm:$0xff]
        %v797 = vld [vmem:[#allocation3 + $0x2b0] sm:$0xff]
        %v798 = vld [vmem:[#allocation3 + $0x2b8] sm:$0xff]
        %v799 = vld [vmem:[#allocation3 + $0x2c0] sm:$0xff]
        %v800 = vld [vmem:[#allocation3 + $0x2c8] sm:$0xff]
        %v801 = vld [vmem:[#allocation3 + $0x2d0] sm:$0xff]
        %v802 = vld [vmem:[#allocation3 + $0x2d8] sm:$0xff]
        %v803 = vld [vmem:[#allocation3 + $0x2e0] sm:$0xff]
        %v804 = vld [vmem:[#allocation3 + $0x2e8] sm:$0xff]
        %v805 = vld [vmem:[#allocation3 + $0x2f0] sm:$0xff]
        %v806 = vld [vmem:[#allocation3 + $0x2f8] sm:$0xff]
        %v807 = vld [vmem:[#allocation2] sm:$0xff]
        %v808 = vld [vmem:[#allocation2 + $0x8] sm:$0xff]
        %v809 = vld [vmem:[#allocation2 + $0x10] sm:$0xff]
        %v810 = vld [vmem:[#allocation2 + $0x18] sm:$0xff]
        %v811 = vld [vmem:[#allocation2 + $0x20] sm:$0xff]
        %v812 = vld [vmem:[#allocation2 + $0x28] sm:$0xff]
        %v813 = vld [vmem:[#allocation2 + $0x80] sm:$0xff]
        %v814 = vld [vmem:[#allocation2 + $0x88] sm:$0xff]
        %v815 = vld [vmem:[#allocation2 + $0x90] sm:$0xff]
        %v816 = vld [vmem:[#allocation2 + $0x98] sm:$0xff]
        %v817 = vld [vmem:[#allocation2 + $0xa0] sm:$0xff]
        %v818 = vld [vmem:[#allocation2 + $0xa8] sm:$0xff]
        %v915 = vunpack.c.l.b16 %v711
        %v916 = vunpack.c.h.b16 %v711
        %v917 = vunpack.c.l.b16 %v712
        %v918 = vunpack.c.h.b16 %v712
        %v919 = vunpack.c.l.b16 %v713
        %v920 = vunpack.c.h.b16 %v713
        %v921 = vunpack.c.l.b16 %v714
        %v922 = vunpack.c.h.b16 %v714
        %v923 = vunpack.c.l.b16 %v715
        %v924 = vunpack.c.h.b16 %v715
        %v925 = vunpack.c.l.b16 %v716
        %v926 = vunpack.c.h.b16 %v716
        %v927 = vunpack.c.l.b16 %v717
        %v928 = vunpack.c.h.b16 %v717
        %v929 = vunpack.c.l.b16 %v718
        %v930 = vunpack.c.h.b16 %v718
        %v931 = vunpack.c.l.b16 %v719
        %v932 = vunpack.c.h.b16 %v719
        %v933 = vunpack.c.l.b16 %v720
        %v934 = vunpack.c.h.b16 %v720
        %v935 = vunpack.c.l.b16 %v721
        %v936 = vunpack.c.h.b16 %v721
        %v937 = vunpack.c.l.b16 %v722
        %v938 = vunpack.c.h.b16 %v722
        %v939 = vunpack.c.l.b16 %v723
        %v940 = vunpack.c.h.b16 %v723
        %v941 = vunpack.c.l.b16 %v724
        %v942 = vunpack.c.h.b16 %v724
        %v943 = vunpack.c.l.b16 %v725
        %v944 = vunpack.c.h.b16 %v725
        %v945 = vunpack.c.l.b16 %v726
        %v946 = vunpack.c.h.b16 %v726
        %v947 = vunpack.c.l.b16 %v727
        %v948 = vunpack.c.h.b16 %v727
        %v949 = vunpack.c.l.b16 %v728
        %v950 = vunpack.c.h.b16 %v728
        %v951 = vunpack.c.l.b16 %v729
        %v952 = vunpack.c.h.b16 %v729
        %v953 = vunpack.c.l.b16 %v730
        %v954 = vunpack.c.h.b16 %v730
        %v955 = vunpack.c.l.b16 %v731
        %v956 = vunpack.c.h.b16 %v731
        %v957 = vunpack.c.l.b16 %v732
        %v958 = vunpack.c.h.b16 %v732
        %v959 = vunpack.c.l.b16 %v733
        %v960 = vunpack.c.h.b16 %v733
        %v961 = vunpack.c.l.b16 %v734
        %v962 = vunpack.c.h.b16 %v734
        %v963 = vunpack.c.l.b16 %v735
        %v964 = vunpack.c.h.b16 %v735
        %v965 = vunpack.c.l.b16 %v736
        %v966 = vunpack.c.h.b16 %v736
        %v967 = vunpack.c.l.b16 %v737
        %v968 = vunpack.c.h.b16 %v737
        %v969 = vunpack.c.l.b16 %v738
        %v970 = vunpack.c.h.b16 %v738
        %v971 = vunpack.c.l.b16 %v739
        %v972 = vunpack.c.h.b16 %v739
        %v973 = vunpack.c.l.b16 %v740
        %v974 = vunpack.c.h.b16 %v740
        %v975 = vunpack.c.l.b16 %v741
        %v976 = vunpack.c.h.b16 %v741
        %v977 = vunpack.c.l.b16 %v742
        %v978 = vunpack.c.h.b16 %v742
        %v979 = vunpack.c.l.b16 %v743
        %v980 = vunpack.c.h.b16 %v743
        %v981 = vunpack.c.l.b16 %v744
        %v982 = vunpack.c.h.b16 %v744
        %v983 = vunpack.c.l.b16 %v745
        %v984 = vunpack.c.h.b16 %v745
        %v985 = vunpack.c.l.b16 %v746
        %v986 = vunpack.c.h.b16 %v746
        %v987 = vunpack.c.l.b16 %v747
        %v988 = vunpack.c.h.b16 %v747
        %v989 = vunpack.c.l.b16 %v748
        %v990 = vunpack.c.h.b16 %v748
        %v991 = vunpack.c.l.b16 %v749
        %v992 = vunpack.c.h.b16 %v749
        %v993 = vunpack.c.l.b16 %v750
        %v994 = vunpack.c.h.b16 %v750
        %v995 = vunpack.c.l.b16 %v751
        %v996 = vunpack.c.h.b16 %v751
        %v997 = vunpack.c.l.b16 %v752
        %v998 = vunpack.c.h.b16 %v752
        %v999 = vunpack.c.l.b16 %v753
        %v1000 = vunpack.c.h.b16 %v753
        %v1001 = vunpack.c.l.b16 %v754
        %v1002 = vunpack.c.h.b16 %v754
        %v1003 = vunpack.c.l.b16 %v755
        %v1004 = vunpack.c.h.b16 %v755
        %v1005 = vunpack.c.l.b16 %v756
        %v1006 = vunpack.c.h.b16 %v756
        %v1007 = vunpack.c.l.b16 %v757
        %v1008 = vunpack.c.h.b16 %v757
        %v1009 = vunpack.c.l.b16 %v758
        %v1010 = vunpack.c.h.b16 %v758
        %v1011 = vunpack.c.l.b16 %v759
        %v1012 = vunpack.c.h.b16 %v759
        %v1013 = vunpack.c.l.b16 %v760
        %v1014 = vunpack.c.h.b16 %v760
        %v1015 = vunpack.c.l.b16 %v761
        %v1016 = vunpack.c.h.b16 %v761
        %v1017 = vunpack.c.l.b16 %v762
        %v1018 = vunpack.c.h.b16 %v762
        %v1019 = vunpack.c.l.b16 %v763
        %v1020 = vunpack.c.h.b16 %v763
        %v1021 = vunpack.c.l.b16 %v764
        %v1022 = vunpack.c.h.b16 %v764
        %v1023 = vunpack.c.l.b16 %v765
        %v1024 = vunpack.c.h.b16 %v765
        %v1025 = vunpack.c.l.b16 %v766
        %v1026 = vunpack.c.h.b16 %v766
        %v1027 = vunpack.c.l.b16 %v767
        %v1028 = vunpack.c.h.b16 %v767
        %v1029 = vunpack.c.l.b16 %v768
        %v1030 = vunpack.c.h.b16 %v768
        %v1031 = vunpack.c.l.b16 %v769
        %v1032 = vunpack.c.h.b16 %v769
        %v1033 = vunpack.c.l.b16 %v770
        %v1034 = vunpack.c.h.b16 %v770
        %v1035 = vunpack.c.l.b16 %v771
        %v1036 = vunpack.c.h.b16 %v771
        %v1037 = vunpack.c.l.b16 %v772
        %v1038 = vunpack.c.h.b16 %v772
        %v1039 = vunpack.c.l.b16 %v773
        %v1040 = vunpack.c.h.b16 %v773
        %v1041 = vunpack.c.l.b16 %v774
        %v1042 = vunpack.c.h.b16 %v774
        %v1043 = vunpack.c.l.b16 %v775
        %v1044 = vunpack.c.h.b16 %v775
        %v1045 = vunpack.c.l.b16 %v776
        %v1046 = vunpack.c.h.b16 %v776
        %v1047 = vunpack.c.l.b16 %v777
        %v1048 = vunpack.c.h.b16 %v777
        %v1049 = vunpack.c.l.b16 %v778
        %v1050 = vunpack.c.h.b16 %v778
        %v1051 = vunpack.c.l.b16 %v779
        %v1052 = vunpack.c.h.b16 %v779
        %v1053 = vunpack.c.l.b16 %v780
        %v1054 = vunpack.c.h.b16 %v780
        %v1055 = vunpack.c.l.b16 %v781
        %v1056 = vunpack.c.h.b16 %v781
        %v1057 = vunpack.c.l.b16 %v782
        %v1058 = vunpack.c.h.b16 %v782
        %v1059 = vunpack.c.l.b16 %v783
        %v1060 = vunpack.c.h.b16 %v783
        %v1061 = vunpack.c.l.b16 %v784
        %v1062 = vunpack.c.h.b16 %v784
        %v1063 = vunpack.c.l.b16 %v785
        %v1064 = vunpack.c.h.b16 %v785
        %v1065 = vunpack.c.l.b16 %v786
        %v1066 = vunpack.c.h.b16 %v786
        %v1067 = vunpack.c.l.b16 %v787
        %v1068 = vunpack.c.h.b16 %v787
        %v1069 = vunpack.c.l.b16 %v788
        %v1070 = vunpack.c.h.b16 %v788
        %v1071 = vunpack.c.l.b16 %v789
        %v1072 = vunpack.c.h.b16 %v789
        %v1073 = vunpack.c.l.b16 %v790
        %v1074 = vunpack.c.h.b16 %v790
        %v1075 = vunpack.c.l.b16 %v791
        %v1076 = vunpack.c.h.b16 %v791
        %v1077 = vunpack.c.l.b16 %v792
        %v1078 = vunpack.c.h.b16 %v792
        %v1079 = vunpack.c.l.b16 %v793
        %v1080 = vunpack.c.h.b16 %v793
        %v1081 = vunpack.c.l.b16 %v794
        %v1082 = vunpack.c.h.b16 %v794
        %v1083 = vunpack.c.l.b16 %v795
        %v1084 = vunpack.c.h.b16 %v795
        %v1085 = vunpack.c.l.b16 %v796
        %v1086 = vunpack.c.h.b16 %v796
        %v1087 = vunpack.c.l.b16 %v797
        %v1088 = vunpack.c.h.b16 %v797
        %v1089 = vunpack.c.l.b16 %v798
        %v1090 = vunpack.c.h.b16 %v798
        %v1091 = vunpack.c.l.b16 %v799
        %v1092 = vunpack.c.h.b16 %v799
        %v1093 = vunpack.c.l.b16 %v800
        %v1094 = vunpack.c.h.b16 %v800
        %v1095 = vunpack.c.l.b16 %v801
        %v1096 = vunpack.c.h.b16 %v801
        %v1097 = vunpack.c.l.b16 %v802
        %v1098 = vunpack.c.h.b16 %v802
        %v1099 = vunpack.c.l.b16 %v803
        %v1100 = vunpack.c.h.b16 %v803
        %v1101 = vunpack.c.l.b16 %v804
        %v1102 = vunpack.c.h.b16 %v804
        %v1103 = vunpack.c.l.b16 %v805
        %v1104 = vunpack.c.h.b16 %v805
        %v1105 = vunpack.c.l.b16 %v806
        %v1106 = vunpack.c.h.b16 %v806
        %v1107 = vpack.c.b16 %v917, %v915
        %v1108 = vpack.c.b16 %v918, %v916
        %v1109 = vpack.c.b16 %v921, %v919
        %v1110 = vpack.c.b16 %v922, %v920
        %v1111 = vpack.c.b16 %v925, %v923
        %v1112 = vpack.c.b16 %v926, %v924
        %v1113 = vpack.c.b16 %v929, %v927
        %v1114 = vpack.c.b16 %v930, %v928
        %v1115 = vpack.c.b16 %v933, %v931
        %v1116 = vpack.c.b16 %v934, %v932
        %v1117 = vpack.c.b16 %v937, %v935
        %v1118 = vpack.c.b16 %v938, %v936
        %v1119 = vpack.c.b16 %v941, %v939
        %v1120 = vpack.c.b16 %v942, %v940
        %v1121 = vpack.c.b16 %v945, %v943
        %v1122 = vpack.c.b16 %v946, %v944
        %v1123 = vpack.c.b16 %v949, %v947
        %v1124 = vpack.c.b16 %v950, %v948
        %v1125 = vpack.c.b16 %v953, %v951
        %v1126 = vpack.c.b16 %v954, %v952
        %v1127 = vpack.c.b16 %v957, %v955
        %v1128 = vpack.c.b16 %v958, %v956
        %v1129 = vpack.c.b16 %v961, %v959
        %v1130 = vpack.c.b16 %v962, %v960
        %v1131 = vpack.c.b16 %v965, %v963
        %v1132 = vpack.c.b16 %v966, %v964
        %v1133 = vpack.c.b16 %v969, %v967
        %v1134 = vpack.c.b16 %v970, %v968
        %v1135 = vpack.c.b16 %v973, %v971
        %v1136 = vpack.c.b16 %v974, %v972
        %v1137 = vpack.c.b16 %v977, %v975
        %v1138 = vpack.c.b16 %v978, %v976
        %v1139 = vpack.c.b16 %v981, %v979
        %v1140 = vpack.c.b16 %v982, %v980
        %v1141 = vpack.c.b16 %v985, %v983
        %v1142 = vpack.c.b16 %v986, %v984
        %v1143 = vpack.c.b16 %v989, %v987
        %v1144 = vpack.c.b16 %v990, %v988
        %v1145 = vpack.c.b16 %v993, %v991
        %v1146 = vpack.c.b16 %v994, %v992
        %v1147 = vpack.c.b16 %v997, %v995
        %v1148 = vpack.c.b16 %v998, %v996
        %v1149 = vpack.c.b16 %v1001, %v999
        %v1150 = vpack.c.b16 %v1002, %v1000
        %v1151 = vpack.c.b16 %v1005, %v1003
        %v1152 = vpack.c.b16 %v1006, %v1004
        %v1153 = vpack.c.b16 %v1009, %v1007
        %v1154 = vpack.c.b16 %v1010, %v1008
        %v1155 = vpack.c.b16 %v1013, %v1011
        %v1156 = vpack.c.b16 %v1014, %v1012
        %v1157 = vpack.c.b16 %v1017, %v1015
        %v1158 = vpack.c.b16 %v1018, %v1016
        %v1159 = vpack.c.b16 %v1021, %v1019
        %v1160 = vpack.c.b16 %v1022, %v1020
        %v1161 = vpack.c.b16 %v1025, %v1023
        %v1162 = vpack.c.b16 %v1026, %v1024
        %v1163 = vpack.c.b16 %v1029, %v1027
        %v1164 = vpack.c.b16 %v1030, %v1028
        %v1165 = vpack.c.b16 %v1033, %v1031
        %v1166 = vpack.c.b16 %v1034, %v1032
        %v1167 = vpack.c.b16 %v1037, %v1035
        %v1168 = vpack.c.b16 %v1038, %v1036
        %v1169 = vpack.c.b16 %v1041, %v1039
        %v1170 = vpack.c.b16 %v1042, %v1040
        %v1171 = vpack.c.b16 %v1045, %v1043
        %v1172 = vpack.c.b16 %v1046, %v1044
        %v1173 = vpack.c.b16 %v1049, %v1047
        %v1174 = vpack.c.b16 %v1050, %v1048
        %v1175 = vpack.c.b16 %v1053, %v1051
        %v1176 = vpack.c.b16 %v1054, %v1052
        %v1177 = vpack.c.b16 %v1057, %v1055
        %v1178 = vpack.c.b16 %v1058, %v1056
        %v1179 = vpack.c.b16 %v1061, %v1059
        %v1180 = vpack.c.b16 %v1062, %v1060
        %v1181 = vpack.c.b16 %v1065, %v1063
        %v1182 = vpack.c.b16 %v1066, %v1064
        %v1183 = vpack.c.b16 %v1069, %v1067
        %v1184 = vpack.c.b16 %v1070, %v1068
        %v1185 = vpack.c.b16 %v1073, %v1071
        %v1186 = vpack.c.b16 %v1074, %v1072
        %v1187 = vpack.c.b16 %v1077, %v1075
        %v1188 = vpack.c.b16 %v1078, %v1076
        %v1189 = vpack.c.b16 %v1081, %v1079
        %v1190 = vpack.c.b16 %v1082, %v1080
        %v1191 = vpack.c.b16 %v1085, %v1083
        %v1192 = vpack.c.b16 %v1086, %v1084
        %v1193 = vpack.c.b16 %v1089, %v1087
        %v1194 = vpack.c.b16 %v1090, %v1088
        %v1195 = vpack.c.b16 %v1093, %v1091
        %v1196 = vpack.c.b16 %v1094, %v1092
        %v1197 = vpack.c.b16 %v1097, %v1095
        %v1198 = vpack.c.b16 %v1098, %v1096
        %v1199 = vpack.c.b16 %v1101, %v1099
        %v1200 = vpack.c.b16 %v1102, %v1100
        %v1201 = vpack.c.b16 %v1105, %v1103
        %v1202 = vpack.c.b16 %v1106, %v1104
        %1299 = vmatprep.subr.bf16.mxu0 %v1108
        %1300 = vmatpush1.bf16.msra.mxu0 %v1107
        %1301 = vmatprep.subr.bf16.mxu0 %v1110
        %1302 = vmatpush1.bf16.msra.mxu0 %v1109
        %1303 = vmatprep.subr.bf16.mxu0 %v1112
        %1304 = vmatpush1.bf16.msra.mxu0 %v1111
        %1305 = vmatprep.subr.bf16.mxu0 %v1114
        %1306 = vmatpush1.bf16.msra.mxu0 %v1113
        %1307 = vmatprep.subr.bf16.mxu0 %v1116
        %1308 = vmatpush1.bf16.msra.mxu0 %v1115
        %1309 = vmatprep.subr.bf16.mxu0 %v1118
        %1310 = vmatpush1.bf16.msra.mxu0 %v1117
        %1311 = vmatprep.subr.bf16.mxu0 %v1120
        %1312 = vmatpush1.bf16.msra.mxu0 %v1119
        %1313 = vmatprep.subr.bf16.mxu0 %v1122
        %1314 = vmatpush1.bf16.msra.mxu0 %v1121
        %1315 = vmatprep.subr.bf16.mxu0 %v1124
        %1316 = vmatpush1.bf16.msra.mxu0 %v1123
        %1317 = vmatprep.subr.bf16.mxu0 %v1126
        %1318 = vmatpush1.bf16.msra.mxu0 %v1125
        %1319 = vmatprep.subr.bf16.mxu0 %v1128
        %1320 = vmatpush1.bf16.msra.mxu0 %v1127
        %1321 = vmatprep.subr.bf16.mxu0 %v1130
        %1322 = vmatpush1.bf16.msra.mxu0 %v1129
        %1323 = vmatprep.subr.bf16.mxu0 %v1132
        %1324 = vmatpush1.bf16.msra.mxu0 %v1131
        %1325 = vmatprep.subr.bf16.mxu0 %v1134
        %1326 = vmatpush1.bf16.msra.mxu0 %v1133
        %1327 = vmatprep.subr.bf16.mxu0 %v1136
        %1328 = vmatpush1.bf16.msra.mxu0 %v1135
        %1329 = vmatprep.subr.bf16.mxu0 %v1138
        %1330 = vmatpush1.bf16.msra.mxu0 %v1137
        %1331 = vmatprep.mubr.bf16.mxu0 %v808
        %1332 = vmatmul.mubr.bf16.gmra.mrb[0].mxu0 %v807
        %v1333 = vpop.f32.mrb[0].mxu0
        %v1334 = vadd.f32 0.0, %v1333
        %v1335 = vpop.f32.mrb[0].mxu0
        %v1336 = vadd.f32 0.0, %v1335
        %v1337 = vpop.f32.mrb[0].mxu0
        %v1338 = vadd.f32 0.0, %v1337
        %v1339 = vpop.f32.mrb[0].mxu0
        %v1340 = vadd.f32 0.0, %v1339
        %1341 = vmatprep.mubr.bf16.mxu0 %v814
        %1342 = vmatmul.mubr.bf16.gmra.mrb[0].mxu0 %v813
        %v1343 = vpop.f32.mrb[0].mxu0
        %v1344 = vadd.f32 0.0, %v1343
        %v1345 = vpop.f32.mrb[0].mxu0
        %v1346 = vadd.f32 0.0, %v1345
        %v1347 = vpop.f32.mrb[0].mxu0
        %v1348 = vadd.f32 0.0, %v1347
        %v1349 = vpop.f32.mrb[0].mxu0
        %v1350 = vadd.f32 0.0, %v1349
        %1351 = vdwg.mxu0
        %1352 = vmatprep.subr.bf16.mxu0 %v1140
        %1353 = vmatpush1.bf16.msra.mxu0 %v1139
        %1354 = vmatprep.subr.bf16.mxu0 %v1142
        %1355 = vmatpush1.bf16.msra.mxu0 %v1141
        %1356 = vmatprep.subr.bf16.mxu0 %v1144
        %1357 = vmatpush1.bf16.msra.mxu0 %v1143
        %1358 = vmatprep.subr.bf16.mxu0 %v1146
        %1359 = vmatpush1.bf16.msra.mxu0 %v1145
        %1360 = vmatprep.subr.bf16.mxu0 %v1148
        %1361 = vmatpush1.bf16.msra.mxu0 %v1147
        %1362 = vmatprep.subr.bf16.mxu0 %v1150
        %1363 = vmatpush1.bf16.msra.mxu0 %v1149
        %1364 = vmatprep.subr.bf16.mxu0 %v1152
        %1365 = vmatpush1.bf16.msra.mxu0 %v1151
        %1366 = vmatprep.subr.bf16.mxu0 %v1154
        %1367 = vmatpush1.bf16.msra.mxu0 %v1153
        %1368 = vmatprep.subr.bf16.mxu0 %v1156
        %1369 = vmatpush1.bf16.msra.mxu0 %v1155
        %1370 = vmatprep.subr.bf16.mxu0 %v1158
        %1371 = vmatpush1.bf16.msra.mxu0 %v1157
        %1372 = vmatprep.subr.bf16.mxu0 %v1160
        %1373 = vmatpush1.bf16.msra.mxu0 %v1159
        %1374 = vmatprep.subr.bf16.mxu0 %v1162
        %1375 = vmatpush1.bf16.msra.mxu0 %v1161
        %1376 = vmatprep.subr.bf16.mxu0 %v1164
        %1377 = vmatpush1.bf16.msra.mxu0 %v1163
        %1378 = vmatprep.subr.bf16.mxu0 %v1166
        %1379 = vmatpush1.bf16.msra.mxu0 %v1165
        %1380 = vmatprep.subr.bf16.mxu0 %v1168
        %1381 = vmatpush1.bf16.msra.mxu0 %v1167
        %1382 = vmatprep.subr.bf16.mxu0 %v1170
        %1383 = vmatpush1.bf16.msra.mxu0 %v1169
        %1384 = vmatprep.mubr.bf16.mxu0 %v810
        %1385 = vmatmul.mubr.bf16.gmra.mrb[0].mxu0 %v809
        %v1386 = vpop.f32.mrb[0].mxu0
        %v1387 = vadd.f32 %v1334, %v1386
        %v1388 = vpop.f32.mrb[0].mxu0
        %v1389 = vadd.f32 %v1336, %v1388
        %v1390 = vpop.f32.mrb[0].mxu0
        %v1391 = vadd.f32 %v1338, %v1390
        %v1392 = vpop.f32.mrb[0].mxu0
        %v1393 = vadd.f32 %v1340, %v1392
        %1394 = vmatprep.mubr.bf16.mxu0 %v816
        %1395 = vmatmul.mubr.bf16.gmra.mrb[0].mxu0 %v815
        %v1396 = vpop.f32.mrb[0].mxu0
        %v1397 = vadd.f32 %v1344, %v1396
        %v1398 = vpop.f32.mrb[0].mxu0
        %v1399 = vadd.f32 %v1346, %v1398
        %v1400 = vpop.f32.mrb[0].mxu0
        %v1401 = vadd.f32 %v1348, %v1400
        %v1402 = vpop.f32.mrb[0].mxu0
        %v1403 = vadd.f32 %v1350, %v1402
        %1404 = vdwg.mxu0
        %1405 = vmatprep.subr.bf16.mxu0 %v1172
        %1406 = vmatpush1.bf16.msra.mxu0 %v1171
        %1407 = vmatprep.subr.bf16.mxu0 %v1174
        %1408 = vmatpush1.bf16.msra.mxu0 %v1173
        %1409 = vmatprep.subr.bf16.mxu0 %v1176
        %1410 = vmatpush1.bf16.msra.mxu0 %v1175
        %1411 = vmatprep.subr.bf16.mxu0 %v1178
        %1412 = vmatpush1.bf16.msra.mxu0 %v1177
        %1413 = vmatprep.subr.bf16.mxu0 %v1180
        %1414 = vmatpush1.bf16.msra.mxu0 %v1179
        %1415 = vmatprep.subr.bf16.mxu0 %v1182
        %1416 = vmatpush1.bf16.msra.mxu0 %v1181
        %1417 = vmatprep.subr.bf16.mxu0 %v1184
        %1418 = vmatpush1.bf16.msra.mxu0 %v1183
        %1419 = vmatprep.subr.bf16.mxu0 %v1186
        %1420 = vmatpush1.bf16.msra.mxu0 %v1185
        %1421 = vmatprep.subr.bf16.mxu0 %v1188
        %1422 = vmatpush1.bf16.msra.mxu0 %v1187
        %1423 = vmatprep.subr.bf16.mxu0 %v1190
        %1424 = vmatpush1.bf16.msra.mxu0 %v1189
        %1425 = vmatprep.subr.bf16.mxu0 %v1192
        %1426 = vmatpush1.bf16.msra.mxu0 %v1191
        %1427 = vmatprep.subr.bf16.mxu0 %v1194
        %1428 = vmatpush1.bf16.msra.mxu0 %v1193
        %1429 = vmatprep.subr.bf16.mxu0 %v1196
        %1430 = vmatpush1.bf16.msra.mxu0 %v1195
        %1431 = vmatprep.subr.bf16.mxu0 %v1198
        %1432 = vmatpush1.bf16.msra.mxu0 %v1197
        %1433 = vmatprep.subr.bf16.mxu0 %v1200
        %1434 = vmatpush1.bf16.msra.mxu0 %v1199
        %1435 = vmatprep.subr.bf16.mxu0 %v1202
        %1436 = vmatpush1.bf16.msra.mxu0 %v1201
        %1437 = vmatprep.mubr.bf16.mxu0 %v812
        %1438 = vmatmul.mubr.bf16.gmra.mrb[0].mxu0 %v811
        %v1439 = vpop.f32.mrb[0].mxu0
        %v1440 = vadd.f32 %v1387, %v1439
        %v1441 = vpop.f32.mrb[0].mxu0
        %v1442 = vadd.f32 %v1389, %v1441
        %v1443 = vpop.f32.mrb[0].mxu0
        %v1444 = vadd.f32 %v1391, %v1443
        %v1445 = vpop.f32.mrb[0].mxu0
        %v1446 = vadd.f32 %v1393, %v1445
        %1447 = vmatprep.mubr.bf16.mxu0 %v818
        %1448 = vmatmul.mubr.bf16.gmra.mrb[0].mxu0 %v817
        %v1449 = vpop.f32.mrb[0].mxu0
        %v1450 = vadd.f32 %v1397, %v1449
        %v1451 = vpop.f32.mrb[0].mxu0
        %v1452 = vadd.f32 %v1399, %v1451
        %v1453 = vpop.f32.mrb[0].mxu0
        %v1454 = vadd.f32 %v1401, %v1453
        %v1455 = vpop.f32.mrb[0].mxu0
        %v1456 = vadd.f32 %v1403, %v1455
        %1457 = vdwg.mxu0
        %v1458 = vld [vmem:[#allocation2 + $0x10] sm:$0xff]
        %v1459 = vld [vmem:[#allocation2 + $0x18] sm:$0xff]
        %v1460 = vld [vmem:[#allocation2 + $0x20] sm:$0xff]
        %v1461 = vld [vmem:[#allocation2 + $0x28] sm:$0xff]
        %v1462 = vld [vmem:[#allocation2 + $0x30] sm:$0xff]
        %v1463 = vld [vmem:[#allocation2 + $0x38] sm:$0xff]
        %v1464 = vld [vmem:[#allocation2 + $0x90] sm:$0xff]
        %v1465 = vld [vmem:[#allocation2 + $0x98] sm:$0xff]
        %v1466 = vld [vmem:[#allocation2 + $0xa0] sm:$0xff]
        %v1467 = vld [vmem:[#allocation2 + $0xa8] sm:$0xff]
        %v1468 = vld [vmem:[#allocation2 + $0xb0] sm:$0xff]
        %v1469 = vld [vmem:[#allocation2 + $0xb8] sm:$0xff]
        %1470 = vmatprep.subr.bf16.mxu0 %v1108
        %1471 = vmatpush1.bf16.msra.mxu0 %v1107
        %1472 = vmatprep.subr.bf16.mxu0 %v1110
        %1473 = vmatpush1.bf16.msra.mxu0 %v1109
        %1474 = vmatprep.subr.bf16.mxu0 %v1112
        %1475 = vmatpush1.bf16.msra.mxu0 %v1111
        %1476 = vmatprep.subr.bf16.mxu0 %v1114
        %1477 = vmatpush1.bf16.msra.mxu0 %v1113
        %1478 = vmatprep.subr.bf16.mxu0 %v1116
        %1479 = vmatpush1.bf16.msra.mxu0 %v1115
        %1480 = vmatprep.subr.bf16.mxu0 %v1118
        %1481 = vmatpush1.bf16.msra.mxu0 %v1117
        %1482 = vmatprep.subr.bf16.mxu0 %v1120
        %1483 = vmatpush1.bf16.msra.mxu0 %v1119
        %1484 = vmatprep.subr.bf16.mxu0 %v1122
        %1485 = vmatpush1.bf16.msra.mxu0 %v1121
        %1486 = vmatprep.subr.bf16.mxu0 %v1124
        %1487 = vmatpush1.bf16.msra.mxu0 %v1123
        %1488 = vmatprep.subr.bf16.mxu0 %v1126
        %1489 = vmatpush1.bf16.msra.mxu0 %v1125
        %1490 = vmatprep.subr.bf16.mxu0 %v1128
        %1491 = vmatpush1.bf16.msra.mxu0 %v1127
        %1492 = vmatprep.subr.bf16.mxu0 %v1130
        %1493 = vmatpush1.bf16.msra.mxu0 %v1129
        %1494 = vmatprep.subr.bf16.mxu0 %v1132
        %1495 = vmatpush1.bf16.msra.mxu0 %v1131
        %1496 = vmatprep.subr.bf16.mxu0 %v1134
        %1497 = vmatpush1.bf16.msra.mxu0 %v1133
        %1498 = vmatprep.subr.bf16.mxu0 %v1136
        %1499 = vmatpush1.bf16.msra.mxu0 %v1135
        %1500 = vmatprep.subr.bf16.mxu0 %v1138
        %1501 = vmatpush1.bf16.msra.mxu0 %v1137
        %1502 = vmatprep.mubr.bf16.mxu0 %v1459
        %1503 = vmatmul.mubr.bf16.gmra.mrb[0].mxu0 %v1458
        %v1504 = vpop.f32.mrb[0].mxu0
        %v1505 = vadd.f32 0.0, %v1504
        %v1506 = vpop.f32.mrb[0].mxu0
        %v1507 = vadd.f32 0.0, %v1506
        %v1508 = vpop.f32.mrb[0].mxu0
        %v1509 = vadd.f32 0.0, %v1508
        %v1510 = vpop.f32.mrb[0].mxu0
        %v1511 = vadd.f32 0.0, %v1510
        %1512 = vmatprep.mubr.bf16.mxu0 %v1465
        %1513 = vmatmul.mubr.bf16.gmra.mrb[0].mxu0 %v1464
        %v1514 = vpop.f32.mrb[0].mxu0
        %v1515 = vadd.f32 0.0, %v1514
        %v1516 = vpop.f32.mrb[0].mxu0
        %v1517 = vadd.f32 0.0, %v1516
        %v1518 = vpop.f32.mrb[0].mxu0
        %v1519 = vadd.f32 0.0, %v1518
        %v1520 = vpop.f32.mrb[0].mxu0
        %v1521 = vadd.f32 0.0, %v1520
        %1522 = vdwg.mxu0
        %1523 = vmatprep.subr.bf16.mxu0 %v1140
        %1524 = vmatpush1.bf16.msra.mxu0 %v1139
        %1525 = vmatprep.subr.bf16.mxu0 %v1142
        %1526 = vmatpush1.bf16.msra.mxu0 %v1141
        %1527 = vmatprep.subr.bf16.mxu0 %v1144
        %1528 = vmatpush1.bf16.msra.mxu0 %v1143
        %1529 = vmatprep.subr.bf16.mxu0 %v1146
        %1530 = vmatpush1.bf16.msra.mxu0 %v1145
        %1531 = vmatprep.subr.bf16.mxu0 %v1148
        %1532 = vmatpush1.bf16.msra.mxu0 %v1147
        %1533 = vmatprep.subr.bf16.mxu0 %v1150
        %1534 = vmatpush1.bf16.msra.mxu0 %v1149
        %1535 = vmatprep.subr.bf16.mxu0 %v1152
        %1536 = vmatpush1.bf16.msra.mxu0 %v1151
        %1537 = vmatprep.subr.bf16.mxu0 %v1154
        %1538 = vmatpush1.bf16.msra.mxu0 %v1153
        %1539 = vmatprep.subr.bf16.mxu0 %v1156
        %1540 = vmatpush1.bf16.msra.mxu0 %v1155
        %1541 = vmatprep.subr.bf16.mxu0 %v1158
        %1542 = vmatpush1.bf16.msra.mxu0 %v1157
        %1543 = vmatprep.subr.bf16.mxu0 %v1160
        %1544 = vmatpush1.bf16.msra.mxu0 %v1159
        %1545 = vmatprep.subr.bf16.mxu0 %v1162
        %1546 = vmatpush1.bf16.msra.mxu0 %v1161
        %1547 = vmatprep.subr.bf16.mxu0 %v1164
        %1548 = vmatpush1.bf16.msra.mxu0 %v1163
        %1549 = vmatprep.subr.bf16.mxu0 %v1166
        %1550 = vmatpush1.bf16.msra.mxu0 %v1165
        %1551 = vmatprep.subr.bf16.mxu0 %v1168
        %1552 = vmatpush1.bf16.msra.mxu0 %v1167
        %1553 = vmatprep.subr.bf16.mxu0 %v1170
        %1554 = vmatpush1.bf16.msra.mxu0 %v1169
        %1555 = vmatprep.mubr.bf16.mxu0 %v1461
        %1556 = vmatmul.mubr.bf16.gmra.mrb[0].mxu0 %v1460
        %v1557 = vpop.f32.mrb[0].mxu0
        %v1558 = vadd.f32 %v1505, %v1557
        %v1559 = vpop.f32.mrb[0].mxu0
        %v1560 = vadd.f32 %v1507, %v1559
        %v1561 = vpop.f32.mrb[0].mxu0
        %v1562 = vadd.f32 %v1509, %v1561
        %v1563 = vpop.f32.mrb[0].mxu0
        %v1564 = vadd.f32 %v1511, %v1563
        %1565 = vmatprep.mubr.bf16.mxu0 %v1467
        %1566 = vmatmul.mubr.bf16.gmra.mrb[0].mxu0 %v1466
        %v1567 = vpop.f32.mrb[0].mxu0
        %v1568 = vadd.f32 %v1515, %v1567
        %v1569 = vpop.f32.mrb[0].mxu0
        %v1570 = vadd.f32 %v1517, %v1569
        %v1571 = vpop.f32.mrb[0].mxu0
        %v1572 = vadd.f32 %v1519, %v1571
        %v1573 = vpop.f32.mrb[0].mxu0
        %v1574 = vadd.f32 %v1521, %v1573
        %1575 = vdwg.mxu0
        %1576 = vmatprep.subr.bf16.mxu0 %v1172
        %1577 = vmatpush1.bf16.msra.mxu0 %v1171
        %1578 = vmatprep.subr.bf16.mxu0 %v1174
        %1579 = vmatpush1.bf16.msra.mxu0 %v1173
        %1580 = vmatprep.subr.bf16.mxu0 %v1176
        %1581 = vmatpush1.bf16.msra.mxu0 %v1175
        %1582 = vmatprep.subr.bf16.mxu0 %v1178
        %1583 = vmatpush1.bf16.msra.mxu0 %v1177
        %1584 = vmatprep.subr.bf16.mxu0 %v1180
        %1585 = vmatpush1.bf16.msra.mxu0 %v1179
        %1586 = vmatprep.subr.bf16.mxu0 %v1182
        %1587 = vmatpush1.bf16.msra.mxu0 %v1181
        %1588 = vmatprep.subr.bf16.mxu0 %v1184
        %1589 = vmatpush1.bf16.msra.mxu0 %v1183
        %1590 = vmatprep.subr.bf16.mxu0 %v1186
        %1591 = vmatpush1.bf16.msra.mxu0 %v1185
        %1592 = vmatprep.subr.bf16.mxu0 %v1188
        %1593 = vmatpush1.bf16.msra.mxu0 %v1187
        %1594 = vmatprep.subr.bf16.mxu0 %v1190
        %1595 = vmatpush1.bf16.msra.mxu0 %v1189
        %1596 = vmatprep.subr.bf16.mxu0 %v1192
        %1597 = vmatpush1.bf16.msra.mxu0 %v1191
        %1598 = vmatprep.subr.bf16.mxu0 %v1194
        %1599 = vmatpush1.bf16.msra.mxu0 %v1193
        %1600 = vmatprep.subr.bf16.mxu0 %v1196
        %1601 = vmatpush1.bf16.msra.mxu0 %v1195
        %1602 = vmatprep.subr.bf16.mxu0 %v1198
        %1603 = vmatpush1.bf16.msra.mxu0 %v1197
        %1604 = vmatprep.subr.bf16.mxu0 %v1200
        %1605 = vmatpush1.bf16.msra.mxu0 %v1199
        %1606 = vmatprep.subr.bf16.mxu0 %v1202
        %1607 = vmatpush1.bf16.msra.mxu0 %v1201
        %1608 = vmatprep.mubr.bf16.mxu0 %v1463
        %1609 = vmatmul.mubr.bf16.gmra.mrb[0].mxu0 %v1462
        %v1610 = vpop.f32.mrb[0].mxu0
        %v1611 = vadd.f32 %v1558, %v1610
        %v1612 = vpop.f32.mrb[0].mxu0
        %v1613 = vadd.f32 %v1560, %v1612
        %v1614 = vpop.f32.mrb[0].mxu0
        %v1615 = vadd.f32 %v1562, %v1614
        %v1616 = vpop.f32.mrb[0].mxu0
        %v1617 = vadd.f32 %v1564, %v1616
        %1618 = vmatprep.mubr.bf16.mxu0 %v1469
        %1619 = vmatmul.mubr.bf16.gmra.mrb[0].mxu0 %v1468
        %v1620 = vpop.f32.mrb[0].mxu0
        %v1621 = vadd.f32 %v1568, %v1620
        %v1622 = vpop.f32.mrb[0].mxu0
        %v1623 = vadd.f32 %v1570, %v1622
        %v1624 = vpop.f32.mrb[0].mxu0
        %v1625 = vadd.f32 %v1572, %v1624
        %v1626 = vpop.f32.mrb[0].mxu0
        %v1627 = vadd.f32 %v1574, %v1626
        %1628 = vdwg.mxu0
        %v1629 = vmax.f32 %v1440, %v1611
        %v1630 = vmax.f32 %v1442, %v1613
        %v1631 = vmax.f32 %v1444, %v1615
        %v1632 = vmax.f32 %v1446, %v1617
        %v1633 = vmax.f32 %v1450, %v1621
        %v1634 = vmax.f32 %v1452, %v1623
        %v1635 = vmax.f32 %v1454, %v1625
        %v1636 = vmax.f32 %v1456, %v1627
        %v1637 = vld [vmem:[#allocation2 + $0x20] sm:$0xff]
        %v1638 = vld [vmem:[#allocation2 + $0x28] sm:$0xff]
        %v1639 = vld [vmem:[#allocation2 + $0x30] sm:$0xff]
        %v1640 = vld [vmem:[#allocation2 + $0x38] sm:$0xff]
        %v1641 = vld [vmem:[#allocation2 + $0x40] sm:$0xff]
        %v1642 = vld [vmem:[#allocation2 + $0x48] sm:$0xff]
        %v1643 = vld [vmem:[#allocation2 + $0xa0] sm:$0xff]
        %v1644 = vld [vmem:[#allocation2 + $0xa8] sm:$0xff]
        %v1645 = vld [vmem:[#allocation2 + $0xb0] sm:$0xff]
        %v1646 = vld [vmem:[#allocation2 + $0xb8] sm:$0xff]
        %v1647 = vld [vmem:[#allocation2 + $0xc0] sm:$0xff]
        %v1648 = vld [vmem:[#allocation2 + $0xc8] sm:$0xff]
        %1649 = vmatprep.subr.bf16.mxu0 %v1108
        %1650 = vmatpush1.bf16.msra.mxu0 %v1107
        %1651 = vmatprep.subr.bf16.mxu0 %v1110
        %1652 = vmatpush1.bf16.msra.mxu0 %v1109
        %1653 = vmatprep.subr.bf16.mxu0 %v1112
        %1654 = vmatpush1.bf16.msra.mxu0 %v1111
        %1655 = vmatprep.subr.bf16.mxu0 %v1114
        %1656 = vmatpush1.bf16.msra.mxu0 %v1113
        %1657 = vmatprep.subr.bf16.mxu0 %v1116
        %1658 = vmatpush1.bf16.msra.mxu0 %v1115
        %1659 = vmatprep.subr.bf16.mxu0 %v1118
        %1660 = vmatpush1.bf16.msra.mxu0 %v1117
        %1661 = vmatprep.subr.bf16.mxu0 %v1120
        %1662 = vmatpush1.bf16.msra.mxu0 %v1119
        %1663 = vmatprep.subr.bf16.mxu0 %v1122
        %1664 = vmatpush1.bf16.msra.mxu0 %v1121
        %1665 = vmatprep.subr.bf16.mxu0 %v1124
        %1666 = vmatpush1.bf16.msra.mxu0 %v1123
        %1667 = vmatprep.subr.bf16.mxu0 %v1126
        %1668 = vmatpush1.bf16.msra.mxu0 %v1125
        %1669 = vmatprep.subr.bf16.mxu0 %v1128
        %1670 = vmatpush1.bf16.msra.mxu0 %v1127
        %1671 = vmatprep.subr.bf16.mxu0 %v1130
        %1672 = vmatpush1.bf16.msra.mxu0 %v1129
        %1673 = vmatprep.subr.bf16.mxu0 %v1132
        %1674 = vmatpush1.bf16.msra.mxu0 %v1131
        %1675 = vmatprep.subr.bf16.mxu0 %v1134
        %1676 = vmatpush1.bf16.msra.mxu0 %v1133
        %1677 = vmatprep.subr.bf16.mxu0 %v1136
        %1678 = vmatpush1.bf16.msra.mxu0 %v1135
        %1679 = vmatprep.subr.bf16.mxu0 %v1138
        %1680 = vmatpush1.bf16.msra.mxu0 %v1137
        %1681 = vmatprep.mubr.bf16.mxu0 %v1638
        %1682 = vmatmul.mubr.bf16.gmra.mrb[0].mxu0 %v1637
        %v1683 = vpop.f32.mrb[0].mxu0
        %v1684 = vadd.f32 0.0, %v1683
        %v1685 = vpop.f32.mrb[0].mxu0
        %v1686 = vadd.f32 0.0, %v1685
        %v1687 = vpop.f32.mrb[0].mxu0
        %v1688 = vadd.f32 0.0, %v1687
        %v1689 = vpop.f32.mrb[0].mxu0
        %v1690 = vadd.f32 0.0, %v1689
        %1691 = vmatprep.mubr.bf16.mxu0 %v1644
        %1692 = vmatmul.mubr.bf16.gmra.mrb[0].mxu0 %v1643
        %v1693 = vpop.f32.mrb[0].mxu0
        %v1694 = vadd.f32 0.0, %v1693
        %v1695 = vpop.f32.mrb[0].mxu0
        %v1696 = vadd.f32 0.0, %v1695
        %v1697 = vpop.f32.mrb[0].mxu0
        %v1698 = vadd.f32 0.0, %v1697
        %v1699 = vpop.f32.mrb[0].mxu0
        %v1700 = vadd.f32 0.0, %v1699
        %1701 = vdwg.mxu0
        %1702 = vmatprep.subr.bf16.mxu0 %v1140
        %1703 = vmatpush1.bf16.msra.mxu0 %v1139
        %1704 = vmatprep.subr.bf16.mxu0 %v1142
        %1705 = vmatpush1.bf16.msra.mxu0 %v1141
        %1706 = vmatprep.subr.bf16.mxu0 %v1144
        %1707 = vmatpush1.bf16.msra.mxu0 %v1143
        %1708 = vmatprep.subr.bf16.mxu0 %v1146
        %1709 = vmatpush1.bf16.msra.mxu0 %v1145
        %1710 = vmatprep.subr.bf16.mxu0 %v1148
        %1711 = vmatpush1.bf16.msra.mxu0 %v1147
        %1712 = vmatprep.subr.bf16.mxu0 %v1150
        %1713 = vmatpush1.bf16.msra.mxu0 %v1149
        %1714 = vmatprep.subr.bf16.mxu0 %v1152
        %1715 = vmatpush1.bf16.msra.mxu0 %v1151
        %1716 = vmatprep.subr.bf16.mxu0 %v1154
        %1717 = vmatpush1.bf16.msra.mxu0 %v1153
        %1718 = vmatprep.subr.bf16.mxu0 %v1156
        %1719 = vmatpush1.bf16.msra.mxu0 %v1155
        %1720 = vmatprep.subr.bf16.mxu0 %v1158
        %1721 = vmatpush1.bf16.msra.mxu0 %v1157
        %1722 = vmatprep.subr.bf16.mxu0 %v1160
        %1723 = vmatpush1.bf16.msra.mxu0 %v1159
        %1724 = vmatprep.subr.bf16.mxu0 %v1162
        %1725 = vmatpush1.bf16.msra.mxu0 %v1161
        %1726 = vmatprep.subr.bf16.mxu0 %v1164
        %1727 = vmatpush1.bf16.msra.mxu0 %v1163
        %1728 = vmatprep.subr.bf16.mxu0 %v1166
        %1729 = vmatpush1.bf16.msra.mxu0 %v1165
        %1730 = vmatprep.subr.bf16.mxu0 %v1168
        %1731 = vmatpush1.bf16.msra.mxu0 %v1167
        %1732 = vmatprep.subr.bf16.mxu0 %v1170
        %1733 = vmatpush1.bf16.msra.mxu0 %v1169
        %1734 = vmatprep.mubr.bf16.mxu0 %v1640
        %1735 = vmatmul.mubr.bf16.gmra.mrb[0].mxu0 %v1639
        %v1736 = vpop.f32.mrb[0].mxu0
        %v1737 = vadd.f32 %v1684, %v1736
        %v1738 = vpop.f32.mrb[0].mxu0
        %v1739 = vadd.f32 %v1686, %v1738
        %v1740 = vpop.f32.mrb[0].mxu0
        %v1741 = vadd.f32 %v1688, %v1740
        %v1742 = vpop.f32.mrb[0].mxu0
        %v1743 = vadd.f32 %v1690, %v1742
        %1744 = vmatprep.mubr.bf16.mxu0 %v1646
        %1745 = vmatmul.mubr.bf16.gmra.mrb[0].mxu0 %v1645
        %v1746 = vpop.f32.mrb[0].mxu0
        %v1747 = vadd.f32 %v1694, %v1746
        %v1748 = vpop.f32.mrb[0].mxu0
        %v1749 = vadd.f32 %v1696, %v1748
        %v1750 = vpop.f32.mrb[0].mxu0
        %v1751 = vadd.f32 %v1698, %v1750
        %v1752 = vpop.f32.mrb[0].mxu0
        %v1753 = vadd.f32 %v1700, %v1752
        %1754 = vdwg.mxu0
        %1755 = vmatprep.subr.bf16.mxu0 %v1172
        %1756 = vmatpush1.bf16.msra.mxu0 %v1171
        %1757 = vmatprep.subr.bf16.mxu0 %v1174
        %1758 = vmatpush1.bf16.msra.mxu0 %v1173
        %1759 = vmatprep.subr.bf16.mxu0 %v1176
        %1760 = vmatpush1.bf16.msra.mxu0 %v1175
        %1761 = vmatprep.subr.bf16.mxu0 %v1178
        %1762 = vmatpush1.bf16.msra.mxu0 %v1177
        %1763 = vmatprep.subr.bf16.mxu0 %v1180
        %1764 = vmatpush1.bf16.msra.mxu0 %v1179
        %1765 = vmatprep.subr.bf16.mxu0 %v1182
        %1766 = vmatpush1.bf16.msra.mxu0 %v1181
        %1767 = vmatprep.subr.bf16.mxu0 %v1184
        %1768 = vmatpush1.bf16.msra.mxu0 %v1183
        %1769 = vmatprep.subr.bf16.mxu0 %v1186
        %1770 = vmatpush1.bf16.msra.mxu0 %v1185
        %1771 = vmatprep.subr.bf16.mxu0 %v1188
        %1772 = vmatpush1.bf16.msra.mxu0 %v1187
        %1773 = vmatprep.subr.bf16.mxu0 %v1190
        %1774 = vmatpush1.bf16.msra.mxu0 %v1189
        %1775 = vmatprep.subr.bf16.mxu0 %v1192
        %1776 = vmatpush1.bf16.msra.mxu0 %v1191
        %1777 = vmatprep.subr.bf16.mxu0 %v1194
        %1778 = vmatpush1.bf16.msra.mxu0 %v1193
        %1779 = vmatprep.subr.bf16.mxu0 %v1196
        %1780 = vmatpush1.bf16.msra.mxu0 %v1195
        %1781 = vmatprep.subr.bf16.mxu0 %v1198
        %1782 = vmatpush1.bf16.msra.mxu0 %v1197
        %1783 = vmatprep.subr.bf16.mxu0 %v1200
        %1784 = vmatpush1.bf16.msra.mxu0 %v1199
        %1785 = vmatprep.subr.bf16.mxu0 %v1202
        %1786 = vmatpush1.bf16.msra.mxu0 %v1201
        %1787 = vmatprep.mubr.bf16.mxu0 %v1642
        %1788 = vmatmul.mubr.bf16.gmra.mrb[0].mxu0 %v1641
        %v1789 = vpop.f32.mrb[0].mxu0
        %v1790 = vadd.f32 %v1737, %v1789
        %v1791 = vpop.f32.mrb[0].mxu0
        %v1792 = vadd.f32 %v1739, %v1791
        %v1793 = vpop.f32.mrb[0].mxu0
        %v1794 = vadd.f32 %v1741, %v1793
        %v1795 = vpop.f32.mrb[0].mxu0
        %v1796 = vadd.f32 %v1743, %v1795
        %1797 = vmatprep.mubr.bf16.mxu0 %v1648
        %1798 = vmatmul.mubr.bf16.gmra.mrb[0].mxu0 %v1647
        %v1799 = vpop.f32.mrb[0].mxu0
        %v1800 = vadd.f32 %v1747, %v1799
        %v1801 = vpop.f32.mrb[0].mxu0
        %v1802 = vadd.f32 %v1749, %v1801
        %v1803 = vpop.f32.mrb[0].mxu0
        %v1804 = vadd.f32 %v1751, %v1803
        %v1805 = vpop.f32.mrb[0].mxu0
        %v1806 = vadd.f32 %v1753, %v1805
        %1807 = vdwg.mxu0
        %v1808 = vmax.f32 %v1629, %v1790
        %v1809 = vmax.f32 %v1630, %v1792
        %v1810 = vmax.f32 %v1631, %v1794
        %v1811 = vmax.f32 %v1632, %v1796
        %v1812 = vmax.f32 %v1633, %v1800
        %v1813 = vmax.f32 %v1634, %v1802
        %v1814 = vmax.f32 %v1635, %v1804
        %v1815 = vmax.f32 %v1636, %v1806
        %v1816 = vld [vmem:[#allocation2 + $0x30] sm:$0xff]
        %v1817 = vld [vmem:[#allocation2 + $0x38] sm:$0xff]
        %v1818 = vld [vmem:[#allocation2 + $0x40] sm:$0xff]
        %v1819 = vld [vmem:[#allocation2 + $0x48] sm:$0xff]
        %v1820 = vld [vmem:[#allocation2 + $0x50] sm:$0xff]
        %v1821 = vld [vmem:[#allocation2 + $0x58] sm:$0xff]
        %v1822 = vld [vmem:[#allocation2 + $0xb0] sm:$0xff]
        %v1823 = vld [vmem:[#allocation2 + $0xb8] sm:$0xff]
        %v1824 = vld [vmem:[#allocation2 + $0xc0] sm:$0xff]
        %v1825 = vld [vmem:[#allocation2 + $0xc8] sm:$0xff]
        %v1826 = vld [vmem:[#allocation2 + $0xd0] sm:$0xff]
        %v1827 = vld [vmem:[#allocation2 + $0xd8] sm:$0xff]
        %1828 = vmatprep.subr.bf16.mxu0 %v1108
        %1829 = vmatpush1.bf16.msra.mxu0 %v1107
        %1830 = vmatprep.subr.bf16.mxu0 %v1110
        %1831 = vmatpush1.bf16.msra.mxu0 %v1109
        %1832 = vmatprep.subr.bf16.mxu0 %v1112
        %1833 = vmatpush1.bf16.msra.mxu0 %v1111
        %1834 = vmatprep.subr.bf16.mxu0 %v1114
        %1835 = vmatpush1.bf16.msra.mxu0 %v1113
        %1836 = vmatprep.subr.bf16.mxu0 %v1116
        %1837 = vmatpush1.bf16.msra.mxu0 %v1115
        %1838 = vmatprep.subr.bf16.mxu0 %v1118
        %1839 = vmatpush1.bf16.msra.mxu0 %v1117
        %1840 = vmatprep.subr.bf16.mxu0 %v1120
        %1841 = vmatpush1.bf16.msra.mxu0 %v1119
        %1842 = vmatprep.subr.bf16.mxu0 %v1122
        %1843 = vmatpush1.bf16.msra.mxu0 %v1121
        %1844 = vmatprep.subr.bf16.mxu0 %v1124
        %1845 = vmatpush1.bf16.msra.mxu0 %v1123
        %1846 = vmatprep.subr.bf16.mxu0 %v1126
        %1847 = vmatpush1.bf16.msra.mxu0 %v1125
        %1848 = vmatprep.subr.bf16.mxu0 %v1128
        %1849 = vmatpush1.bf16.msra.mxu0 %v1127
        %1850 = vmatprep.subr.bf16.mxu0 %v1130
        %1851 = vmatpush1.bf16.msra.mxu0 %v1129
        %1852 = vmatprep.subr.bf16.mxu0 %v1132
        %1853 = vmatpush1.bf16.msra.mxu0 %v1131
        %1854 = vmatprep.subr.bf16.mxu0 %v1134
        %1855 = vmatpush1.bf16.msra.mxu0 %v1133
        %1856 = vmatprep.subr.bf16.mxu0 %v1136
        %1857 = vmatpush1.bf16.msra.mxu0 %v1135
        %1858 = vmatprep.subr.bf16.mxu0 %v1138
        %1859 = vmatpush1.bf16.msra.mxu0 %v1137
        %1860 = vmatprep.mubr.bf16.mxu0 %v1817
        %1861 = vmatmul.mubr.bf16.gmra.mrb[0].mxu0 %v1816
        %v1862 = vpop.f32.mrb[0].mxu0
        %v1863 = vadd.f32 0.0, %v1862
        %v1864 = vpop.f32.mrb[0].mxu0
        %v1865 = vadd.f32 0.0, %v1864
        %v1866 = vpop.f32.mrb[0].mxu0
        %v1867 = vadd.f32 0.0, %v1866
        %v1868 = vpop.f32.mrb[0].mxu0
        %v1869 = vadd.f32 0.0, %v1868
        %1870 = vmatprep.mubr.bf16.mxu0 %v1823
        %1871 = vmatmul.mubr.bf16.gmra.mrb[0].mxu0 %v1822
        %v1872 = vpop.f32.mrb[0].mxu0
        %v1873 = vadd.f32 0.0, %v1872
        %v1874 = vpop.f32.mrb[0].mxu0
        %v1875 = vadd.f32 0.0, %v1874
        %v1876 = vpop.f32.mrb[0].mxu0
        %v1877 = vadd.f32 0.0, %v1876
        %v1878 = vpop.f32.mrb[0].mxu0
        %v1879 = vadd.f32 0.0, %v1878
        %1880 = vdwg.mxu0
        %1881 = vmatprep.subr.bf16.mxu0 %v1140
        %1882 = vmatpush1.bf16.msra.mxu0 %v1139
        %1883 = vmatprep.subr.bf16.mxu0 %v1142
        %1884 = vmatpush1.bf16.msra.mxu0 %v1141
        %1885 = vmatprep.subr.bf16.mxu0 %v1144
        %1886 = vmatpush1.bf16.msra.mxu0 %v1143
        %1887 = vmatprep.subr.bf16.mxu0 %v1146
        %1888 = vmatpush1.bf16.msra.mxu0 %v1145
        %1889 = vmatprep.subr.bf16.mxu0 %v1148
        %1890 = vmatpush1.bf16.msra.mxu0 %v1147
        %1891 = vmatprep.subr.bf16.mxu0 %v1150
        %1892 = vmatpush1.bf16.msra.mxu0 %v1149
        %1893 = vmatprep.subr.bf16.mxu0 %v1152
        %1894 = vmatpush1.bf16.msra.mxu0 %v1151
        %1895 = vmatprep.subr.bf16.mxu0 %v1154
        %1896 = vmatpush1.bf16.msra.mxu0 %v1153
        %1897 = vmatprep.subr.bf16.mxu0 %v1156
        %1898 = vmatpush1.bf16.msra.mxu0 %v1155
        %1899 = vmatprep.subr.bf16.mxu0 %v1158
        %1900 = vmatpush1.bf16.msra.mxu0 %v1157
        %1901 = vmatprep.subr.bf16.mxu0 %v1160
        %1902 = vmatpush1.bf16.msra.mxu0 %v1159
        %1903 = vmatprep.subr.bf16.mxu0 %v1162
        %1904 = vmatpush1.bf16.msra.mxu0 %v1161
        %1905 = vmatprep.subr.bf16.mxu0 %v1164
        %1906 = vmatpush1.bf16.msra.mxu0 %v1163
        %1907 = vmatprep.subr.bf16.mxu0 %v1166
        %1908 = vmatpush1.bf16.msra.mxu0 %v1165
        %1909 = vmatprep.subr.bf16.mxu0 %v1168
        %1910 = vmatpush1.bf16.msra.mxu0 %v1167
        %1911 = vmatprep.subr.bf16.mxu0 %v1170
        %1912 = vmatpush1.bf16.msra.mxu0 %v1169
        %1913 = vmatprep.mubr.bf16.mxu0 %v1819
        %1914 = vmatmul.mubr.bf16.gmra.mrb[0].mxu0 %v1818
        %v1915 = vpop.f32.mrb[0].mxu0
        %v1916 = vadd.f32 %v1863, %v1915
        %v1917 = vpop.f32.mrb[0].mxu0
        %v1918 = vadd.f32 %v1865, %v1917
        %v1919 = vpop.f32.mrb[0].mxu0
        %v1920 = vadd.f32 %v1867, %v1919
        %v1921 = vpop.f32.mrb[0].mxu0
        %v1922 = vadd.f32 %v1869, %v1921
        %1923 = vmatprep.mubr.bf16.mxu0 %v1825
        %1924 = vmatmul.mubr.bf16.gmra.mrb[0].mxu0 %v1824
        %v1925 = vpop.f32.mrb[0].mxu0
        %v1926 = vadd.f32 %v1873, %v1925
        %v1927 = vpop.f32.mrb[0].mxu0
        %v1928 = vadd.f32 %v1875, %v1927
        %v1929 = vpop.f32.mrb[0].mxu0
        %v1930 = vadd.f32 %v1877, %v1929
        %v1931 = vpop.f32.mrb[0].mxu0
        %v1932 = vadd.f32 %v1879, %v1931
        %1933 = vdwg.mxu0
        %1934 = vmatprep.subr.bf16.mxu0 %v1172
        %1935 = vmatpush1.bf16.msra.mxu0 %v1171
        %1936 = vmatprep.subr.bf16.mxu0 %v1174
        %1937 = vmatpush1.bf16.msra.mxu0 %v1173
        %1938 = vmatprep.subr.bf16.mxu0 %v1176
        %1939 = vmatpush1.bf16.msra.mxu0 %v1175
        %1940 = vmatprep.subr.bf16.mxu0 %v1178
        %1941 = vmatpush1.bf16.msra.mxu0 %v1177
        %1942 = vmatprep.subr.bf16.mxu0 %v1180
        %1943 = vmatpush1.bf16.msra.mxu0 %v1179
        %1944 = vmatprep.subr.bf16.mxu0 %v1182
        %1945 = vmatpush1.bf16.msra.mxu0 %v1181
        %1946 = vmatprep.subr.bf16.mxu0 %v1184
        %1947 = vmatpush1.bf16.msra.mxu0 %v1183
        %1948 = vmatprep.subr.bf16.mxu0 %v1186
        %1949 = vmatpush1.bf16.msra.mxu0 %v1185
        %1950 = vmatprep.subr.bf16.mxu0 %v1188
        %1951 = vmatpush1.bf16.msra.mxu0 %v1187
        %1952 = vmatprep.subr.bf16.mxu0 %v1190
        %1953 = vmatpush1.bf16.msra.mxu0 %v1189
        %1954 = vmatprep.subr.bf16.mxu0 %v1192
        %1955 = vmatpush1.bf16.msra.mxu0 %v1191
        %1956 = vmatprep.subr.bf16.mxu0 %v1194
        %1957 = vmatpush1.bf16.msra.mxu0 %v1193
        %1958 = vmatprep.subr.bf16.mxu0 %v1196
        %1959 = vmatpush1.bf16.msra.mxu0 %v1195
        %1960 = vmatprep.subr.bf16.mxu0 %v1198
        %1961 = vmatpush1.bf16.msra.mxu0 %v1197
        %1962 = vmatprep.subr.bf16.mxu0 %v1200
        %1963 = vmatpush1.bf16.msra.mxu0 %v1199
        %1964 = vmatprep.subr.bf16.mxu0 %v1202
        %1965 = vmatpush1.bf16.msra.mxu0 %v1201
        %1966 = vmatprep.mubr.bf16.mxu0 %v1821
        %1967 = vmatmul.mubr.bf16.gmra.mrb[0].mxu0 %v1820
        %v1968 = vpop.f32.mrb[0].mxu0
        %v1969 = vadd.f32 %v1916, %v1968
        %v1970 = vpop.f32.mrb[0].mxu0
        %v1971 = vadd.f32 %v1918, %v1970
        %v1972 = vpop.f32.mrb[0].mxu0
        %v1973 = vadd.f32 %v1920, %v1972
        %v1974 = vpop.f32.mrb[0].mxu0
        %v1975 = vadd.f32 %v1922, %v1974
        %1976 = vmatprep.mubr.bf16.mxu0 %v1827
        %1977 = vmatmul.mubr.bf16.gmra.mrb[0].mxu0 %v1826
        %v1978 = vpop.f32.mrb[0].mxu0
        %v1979 = vadd.f32 %v1926, %v1978
        %v1980 = vpop.f32.mrb[0].mxu0
        %v1981 = vadd.f32 %v1928, %v1980
        %v1982 = vpop.f32.mrb[0].mxu0
        %v1983 = vadd.f32 %v1930, %v1982
        %v1984 = vpop.f32.mrb[0].mxu0
        %v1985 = vadd.f32 %v1932, %v1984
        %1986 = vdwg.mxu0
        %v1987 = vmax.f32 %v1808, %v1969
        %v1988 = vmax.f32 %v1809, %v1971
        %v1989 = vmax.f32 %v1810, %v1973
        %v1990 = vmax.f32 %v1811, %v1975
        %v1991 = vmax.f32 %v1812, %v1979
        %v1992 = vmax.f32 %v1813, %v1981
        %v1993 = vmax.f32 %v1814, %v1983
        %v1994 = vmax.f32 %v1815, %v1985
        %v1995 = vld [vmem:[#allocation2 + $0x40] sm:$0xff]
        %v1996 = vld [vmem:[#allocation2 + $0x48] sm:$0xff]
        %v1997 = vld [vmem:[#allocation2 + $0x50] sm:$0xff]
        %v1998 = vld [vmem:[#allocation2 + $0x58] sm:$0xff]
        %v1999 = vld [vmem:[#allocation2 + $0x60] sm:$0xff]
        %v2000 = vld [vmem:[#allocation2 + $0x68] sm:$0xff]
        %v2001 = vld [vmem:[#allocation2 + $0xc0] sm:$0xff]
        %v2002 = vld [vmem:[#allocation2 + $0xc8] sm:$0xff]
        %v2003 = vld [vmem:[#allocation2 + $0xd0] sm:$0xff]
        %v2004 = vld [vmem:[#allocation2 + $0xd8] sm:$0xff]
        %v2005 = vld [vmem:[#allocation2 + $0xe0] sm:$0xff]
        %v2006 = vld [vmem:[#allocation2 + $0xe8] sm:$0xff]
        %2007 = vmatprep.subr.bf16.mxu0 %v1108
        %2008 = vmatpush1.bf16.msra.mxu0 %v1107
        %2009 = vmatprep.subr.bf16.mxu0 %v1110
        %2010 = vmatpush1.bf16.msra.mxu0 %v1109
        %2011 = vmatprep.subr.bf16.mxu0 %v1112
        %2012 = vmatpush1.bf16.msra.mxu0 %v1111
        %2013 = vmatprep.subr.bf16.mxu0 %v1114
        %2014 = vmatpush1.bf16.msra.mxu0 %v1113
        %2015 = vmatprep.subr.bf16.mxu0 %v1116
        %2016 = vmatpush1.bf16.msra.mxu0 %v1115
        %2017 = vmatprep.subr.bf16.mxu0 %v1118
        %2018 = vmatpush1.bf16.msra.mxu0 %v1117
        %2019 = vmatprep.subr.bf16.mxu0 %v1120
        %2020 = vmatpush1.bf16.msra.mxu0 %v1119
        %2021 = vmatprep.subr.bf16.mxu0 %v1122
        %2022 = vmatpush1.bf16.msra.mxu0 %v1121
        %2023 = vmatprep.subr.bf16.mxu0 %v1124
        %2024 = vmatpush1.bf16.msra.mxu0 %v1123
        %2025 = vmatprep.subr.bf16.mxu0 %v1126
        %2026 = vmatpush1.bf16.msra.mxu0 %v1125
        %2027 = vmatprep.subr.bf16.mxu0 %v1128
        %2028 = vmatpush1.bf16.msra.mxu0 %v1127
        %2029 = vmatprep.subr.bf16.mxu0 %v1130
        %2030 = vmatpush1.bf16.msra.mxu0 %v1129
        %2031 = vmatprep.subr.bf16.mxu0 %v1132
        %2032 = vmatpush1.bf16.msra.mxu0 %v1131
        %2033 = vmatprep.subr.bf16.mxu0 %v1134
        %2034 = vmatpush1.bf16.msra.mxu0 %v1133
        %2035 = vmatprep.subr.bf16.mxu0 %v1136
        %2036 = vmatpush1.bf16.msra.mxu0 %v1135
        %2037 = vmatprep.subr.bf16.mxu0 %v1138
        %2038 = vmatpush1.bf16.msra.mxu0 %v1137
        %2039 = vmatprep.mubr.bf16.mxu0 %v1996
        %2040 = vmatmul.mubr.bf16.gmra.mrb[0].mxu0 %v1995
        %v2041 = vpop.f32.mrb[0].mxu0
        %v2042 = vadd.f32 0.0, %v2041
        %v2043 = vpop.f32.mrb[0].mxu0
        %v2044 = vadd.f32 0.0, %v2043
        %v2045 = vpop.f32.mrb[0].mxu0
        %v2046 = vadd.f32 0.0, %v2045
        %v2047 = vpop.f32.mrb[0].mxu0
        %v2048 = vadd.f32 0.0, %v2047
        %2049 = vmatprep.mubr.bf16.mxu0 %v2002
        %2050 = vmatmul.mubr.bf16.gmra.mrb[0].mxu0 %v2001
        %v2051 = vpop.f32.mrb[0].mxu0
        %v2052 = vadd.f32 0.0, %v2051
        %v2053 = vpop.f32.mrb[0].mxu0
        %v2054 = vadd.f32 0.0, %v2053
        %v2055 = vpop.f32.mrb[0].mxu0
        %v2056 = vadd.f32 0.0, %v2055
        %v2057 = vpop.f32.mrb[0].mxu0
        %v2058 = vadd.f32 0.0, %v2057
        %2059 = vdwg.mxu0
        %2060 = vmatprep.subr.bf16.mxu0 %v1140
        %2061 = vmatpush1.bf16.msra.mxu0 %v1139
        %2062 = vmatprep.subr.bf16.mxu0 %v1142
        %2063 = vmatpush1.bf16.msra.mxu0 %v1141
        %2064 = vmatprep.subr.bf16.mxu0 %v1144
        %2065 = vmatpush1.bf16.msra.mxu0 %v1143
        %2066 = vmatprep.subr.bf16.mxu0 %v1146
        %2067 = vmatpush1.bf16.msra.mxu0 %v1145
        %2068 = vmatprep.subr.bf16.mxu0 %v1148
        %2069 = vmatpush1.bf16.msra.mxu0 %v1147
        %2070 = vmatprep.subr.bf16.mxu0 %v1150
        %2071 = vmatpush1.bf16.msra.mxu0 %v1149
        %2072 = vmatprep.subr.bf16.mxu0 %v1152
        %2073 = vmatpush1.bf16.msra.mxu0 %v1151
        %2074 = vmatprep.subr.bf16.mxu0 %v1154
        %2075 = vmatpush1.bf16.msra.mxu0 %v1153
        %2076 = vmatprep.subr.bf16.mxu0 %v1156
        %2077 = vmatpush1.bf16.msra.mxu0 %v1155
        %2078 = vmatprep.subr.bf16.mxu0 %v1158
        %2079 = vmatpush1.bf16.msra.mxu0 %v1157
        %2080 = vmatprep.subr.bf16.mxu0 %v1160
        %2081 = vmatpush1.bf16.msra.mxu0 %v1159
        %2082 = vmatprep.subr.bf16.mxu0 %v1162
        %2083 = vmatpush1.bf16.msra.mxu0 %v1161
        %2084 = vmatprep.subr.bf16.mxu0 %v1164
        %2085 = vmatpush1.bf16.msra.mxu0 %v1163
        %2086 = vmatprep.subr.bf16.mxu0 %v1166
        %2087 = vmatpush1.bf16.msra.mxu0 %v1165
        %2088 = vmatprep.subr.bf16.mxu0 %v1168
        %2089 = vmatpush1.bf16.msra.mxu0 %v1167
        %2090 = vmatprep.subr.bf16.mxu0 %v1170
        %2091 = vmatpush1.bf16.msra.mxu0 %v1169
        %2092 = vmatprep.mubr.bf16.mxu0 %v1998
        %2093 = vmatmul.mubr.bf16.gmra.mrb[0].mxu0 %v1997
        %v2094 = vpop.f32.mrb[0].mxu0
        %v2095 = vadd.f32 %v2042, %v2094
        %v2096 = vpop.f32.mrb[0].mxu0
        %v2097 = vadd.f32 %v2044, %v2096
        %v2098 = vpop.f32.mrb[0].mxu0
        %v2099 = vadd.f32 %v2046, %v2098
        %v2100 = vpop.f32.mrb[0].mxu0
        %v2101 = vadd.f32 %v2048, %v2100
        %2102 = vmatprep.mubr.bf16.mxu0 %v2004
        %2103 = vmatmul.mubr.bf16.gmra.mrb[0].mxu0 %v2003
        %v2104 = vpop.f32.mrb[0].mxu0
        %v2105 = vadd.f32 %v2052, %v2104
        %v2106 = vpop.f32.mrb[0].mxu0
        %v2107 = vadd.f32 %v2054, %v2106
        %v2108 = vpop.f32.mrb[0].mxu0
        %v2109 = vadd.f32 %v2056, %v2108
        %v2110 = vpop.f32.mrb[0].mxu0
        %v2111 = vadd.f32 %v2058, %v2110
        %2112 = vdwg.mxu0
        %2113 = vmatprep.subr.bf16.mxu0 %v1172
        %2114 = vmatpush1.bf16.msra.mxu0 %v1171
        %2115 = vmatprep.subr.bf16.mxu0 %v1174
        %2116 = vmatpush1.bf16.msra.mxu0 %v1173
        %2117 = vmatprep.subr.bf16.mxu0 %v1176
        %2118 = vmatpush1.bf16.msra.mxu0 %v1175
        %2119 = vmatprep.subr.bf16.mxu0 %v1178
        %2120 = vmatpush1.bf16.msra.mxu0 %v1177
        %2121 = vmatprep.subr.bf16.mxu0 %v1180
        %2122 = vmatpush1.bf16.msra.mxu0 %v1179
        %2123 = vmatprep.subr.bf16.mxu0 %v1182
        %2124 = vmatpush1.bf16.msra.mxu0 %v1181
        %2125 = vmatprep.subr.bf16.mxu0 %v1184
        %2126 = vmatpush1.bf16.msra.mxu0 %v1183
        %2127 = vmatprep.subr.bf16.mxu0 %v1186
        %2128 = vmatpush1.bf16.msra.mxu0 %v1185
        %2129 = vmatprep.subr.bf16.mxu0 %v1188
        %2130 = vmatpush1.bf16.msra.mxu0 %v1187
        %2131 = vmatprep.subr.bf16.mxu0 %v1190
        %2132 = vmatpush1.bf16.msra.mxu0 %v1189
        %2133 = vmatprep.subr.bf16.mxu0 %v1192
        %2134 = vmatpush1.bf16.msra.mxu0 %v1191
        %2135 = vmatprep.subr.bf16.mxu0 %v1194
        %2136 = vmatpush1.bf16.msra.mxu0 %v1193
        %2137 = vmatprep.subr.bf16.mxu0 %v1196
        %2138 = vmatpush1.bf16.msra.mxu0 %v1195
        %2139 = vmatprep.subr.bf16.mxu0 %v1198
        %2140 = vmatpush1.bf16.msra.mxu0 %v1197
        %2141 = vmatprep.subr.bf16.mxu0 %v1200
        %2142 = vmatpush1.bf16.msra.mxu0 %v1199
        %2143 = vmatprep.subr.bf16.mxu0 %v1202
        %2144 = vmatpush1.bf16.msra.mxu0 %v1201
        %2145 = vmatprep.mubr.bf16.mxu0 %v2000
        %2146 = vmatmul.mubr.bf16.gmra.mrb[0].mxu0 %v1999
        %v2147 = vpop.f32.mrb[0].mxu0
        %v2148 = vadd.f32 %v2095, %v2147
        %v2149 = vpop.f32.mrb[0].mxu0
        %v2150 = vadd.f32 %v2097, %v2149
        %v2151 = vpop.f32.mrb[0].mxu0
        %v2152 = vadd.f32 %v2099, %v2151
        %v2153 = vpop.f32.mrb[0].mxu0
        %v2154 = vadd.f32 %v2101, %v2153
        %2155 = vmatprep.mubr.bf16.mxu0 %v2006
        %2156 = vmatmul.mubr.bf16.gmra.mrb[0].mxu0 %v2005
        %v2157 = vpop.f32.mrb[0].mxu0
        %v2158 = vadd.f32 %v2105, %v2157
        %v2159 = vpop.f32.mrb[0].mxu0
        %v2160 = vadd.f32 %v2107, %v2159
        %v2161 = vpop.f32.mrb[0].mxu0
        %v2162 = vadd.f32 %v2109, %v2161
        %v2163 = vpop.f32.mrb[0].mxu0
        %v2164 = vadd.f32 %v2111, %v2163
        %2165 = vdwg.mxu0
        %v2166 = vmax.f32 %v1987, %v2148
        %v2167 = vmax.f32 %v1988, %v2150
        %v2168 = vmax.f32 %v1989, %v2152
        %v2169 = vmax.f32 %v1990, %v2154
        %v2170 = vmax.f32 %v1991, %v2158
        %v2171 = vmax.f32 %v1992, %v2160
        %v2172 = vmax.f32 %v1993, %v2162
        %v2173 = vmax.f32 %v1994, %v2164
        %v2174 = vld [vmem:[#allocation2 + $0x50] sm:$0xff]
        %v2175 = vld [vmem:[#allocation2 + $0x58] sm:$0xff]
        %v2176 = vld [vmem:[#allocation2 + $0x60] sm:$0xff]
        %v2177 = vld [vmem:[#allocation2 + $0x68] sm:$0xff]
        %v2178 = vld [vmem:[#allocation2 + $0x70] sm:$0xff]
        %v2179 = vld [vmem:[#allocation2 + $0x78] sm:$0xff]
        %v2180 = vld [vmem:[#allocation2 + $0xd0] sm:$0xff]
        %v2181 = vld [vmem:[#allocation2 + $0xd8] sm:$0xff]
        %v2182 = vld [vmem:[#allocation2 + $0xe0] sm:$0xff]
        %v2183 = vld [vmem:[#allocation2 + $0xe8] sm:$0xff]
        %v2184 = vld [vmem:[#allocation2 + $0xf0] sm:$0xff]
        %v2185 = vld [vmem:[#allocation2 + $0xf8] sm:$0xff]
        %2186 = vmatprep.subr.bf16.mxu0 %v1108
        %2187 = vmatpush1.bf16.msra.mxu0 %v1107
        %2188 = vmatprep.subr.bf16.mxu0 %v1110
        %2189 = vmatpush1.bf16.msra.mxu0 %v1109
        %2190 = vmatprep.subr.bf16.mxu0 %v1112
        %2191 = vmatpush1.bf16.msra.mxu0 %v1111
        %2192 = vmatprep.subr.bf16.mxu0 %v1114
        %2193 = vmatpush1.bf16.msra.mxu0 %v1113
        %2194 = vmatprep.subr.bf16.mxu0 %v1116
        %2195 = vmatpush1.bf16.msra.mxu0 %v1115
        %2196 = vmatprep.subr.bf16.mxu0 %v1118
        %2197 = vmatpush1.bf16.msra.mxu0 %v1117
        %2198 = vmatprep.subr.bf16.mxu0 %v1120
        %2199 = vmatpush1.bf16.msra.mxu0 %v1119
        %2200 = vmatprep.subr.bf16.mxu0 %v1122
        %2201 = vmatpush1.bf16.msra.mxu0 %v1121
        %2202 = vmatprep.subr.bf16.mxu0 %v1124
        %2203 = vmatpush1.bf16.msra.mxu0 %v1123
        %2204 = vmatprep.subr.bf16.mxu0 %v1126
        %2205 = vmatpush1.bf16.msra.mxu0 %v1125
        %2206 = vmatprep.subr.bf16.mxu0 %v1128
        %2207 = vmatpush1.bf16.msra.mxu0 %v1127
        %2208 = vmatprep.subr.bf16.mxu0 %v1130
        %2209 = vmatpush1.bf16.msra.mxu0 %v1129
        %2210 = vmatprep.subr.bf16.mxu0 %v1132
        %2211 = vmatpush1.bf16.msra.mxu0 %v1131
        %2212 = vmatprep.subr.bf16.mxu0 %v1134
        %2213 = vmatpush1.bf16.msra.mxu0 %v1133
        %2214 = vmatprep.subr.bf16.mxu0 %v1136
        %2215 = vmatpush1.bf16.msra.mxu0 %v1135
        %2216 = vmatprep.subr.bf16.mxu0 %v1138
        %2217 = vmatpush1.bf16.msra.mxu0 %v1137
        %2218 = vmatprep.mubr.bf16.mxu0 %v2175
        %2219 = vmatmul.mubr.bf16.gmra.mrb[0].mxu0 %v2174
        %v2220 = vpop.f32.mrb[0].mxu0
        %v2221 = vadd.f32 0.0, %v2220
        %v2222 = vpop.f32.mrb[0].mxu0
        %v2223 = vadd.f32 0.0, %v2222
        %v2224 = vpop.f32.mrb[0].mxu0
        %v2225 = vadd.f32 0.0, %v2224
        %v2226 = vpop.f32.mrb[0].mxu0
        %v2227 = vadd.f32 0.0, %v2226
        %2228 = vmatprep.mubr.bf16.mxu0 %v2181
        %2229 = vmatmul.mubr.bf16.gmra.mrb[0].mxu0 %v2180
        %v2230 = vpop.f32.mrb[0].mxu0
        %v2231 = vadd.f32 0.0, %v2230
        %v2232 = vpop.f32.mrb[0].mxu0
        %v2233 = vadd.f32 0.0, %v2232
        %v2234 = vpop.f32.mrb[0].mxu0
        %v2235 = vadd.f32 0.0, %v2234
        %v2236 = vpop.f32.mrb[0].mxu0
        %v2237 = vadd.f32 0.0, %v2236
        %2238 = vdwg.mxu0
        %2239 = vmatprep.subr.bf16.mxu0 %v1140
        %2240 = vmatpush1.bf16.msra.mxu0 %v1139
        %2241 = vmatprep.subr.bf16.mxu0 %v1142
        %2242 = vmatpush1.bf16.msra.mxu0 %v1141
        %2243 = vmatprep.subr.bf16.mxu0 %v1144
        %2244 = vmatpush1.bf16.msra.mxu0 %v1143
        %2245 = vmatprep.subr.bf16.mxu0 %v1146
        %2246 = vmatpush1.bf16.msra.mxu0 %v1145
        %2247 = vmatprep.subr.bf16.mxu0 %v1148
        %2248 = vmatpush1.bf16.msra.mxu0 %v1147
        %2249 = vmatprep.subr.bf16.mxu0 %v1150
        %2250 = vmatpush1.bf16.msra.mxu0 %v1149
        %2251 = vmatprep.subr.bf16.mxu0 %v1152
        %2252 = vmatpush1.bf16.msra.mxu0 %v1151
        %2253 = vmatprep.subr.bf16.mxu0 %v1154
        %2254 = vmatpush1.bf16.msra.mxu0 %v1153
        %2255 = vmatprep.subr.bf16.mxu0 %v1156
        %2256 = vmatpush1.bf16.msra.mxu0 %v1155
        %2257 = vmatprep.subr.bf16.mxu0 %v1158
        %2258 = vmatpush1.bf16.msra.mxu0 %v1157
        %2259 = vmatprep.subr.bf16.mxu0 %v1160
        %2260 = vmatpush1.bf16.msra.mxu0 %v1159
        %2261 = vmatprep.subr.bf16.mxu0 %v1162
        %2262 = vmatpush1.bf16.msra.mxu0 %v1161
        %2263 = vmatprep.subr.bf16.mxu0 %v1164
        %2264 = vmatpush1.bf16.msra.mxu0 %v1163
        %2265 = vmatprep.subr.bf16.mxu0 %v1166
        %2266 = vmatpush1.bf16.msra.mxu0 %v1165
        %2267 = vmatprep.subr.bf16.mxu0 %v1168
        %2268 = vmatpush1.bf16.msra.mxu0 %v1167
        %2269 = vmatprep.subr.bf16.mxu0 %v1170
        %2270 = vmatpush1.bf16.msra.mxu0 %v1169
        %2271 = vmatprep.mubr.bf16.mxu0 %v2177
        %2272 = vmatmul.mubr.bf16.gmra.mrb[0].mxu0 %v2176
        %v2273 = vpop.f32.mrb[0].mxu0
        %v2274 = vadd.f32 %v2221, %v2273
        %v2275 = vpop.f32.mrb[0].mxu0
        %v2276 = vadd.f32 %v2223, %v2275
        %v2277 = vpop.f32.mrb[0].mxu0
        %v2278 = vadd.f32 %v2225, %v2277
        %v2279 = vpop.f32.mrb[0].mxu0
        %v2280 = vadd.f32 %v2227, %v2279
        %2281 = vmatprep.mubr.bf16.mxu0 %v2183
        %2282 = vmatmul.mubr.bf16.gmra.mrb[0].mxu0 %v2182
        %v2283 = vpop.f32.mrb[0].mxu0
        %v2284 = vadd.f32 %v2231, %v2283
        %v2285 = vpop.f32.mrb[0].mxu0
        %v2286 = vadd.f32 %v2233, %v2285
        %v2287 = vpop.f32.mrb[0].mxu0
        %v2288 = vadd.f32 %v2235, %v2287
        %v2289 = vpop.f32.mrb[0].mxu0
        %v2290 = vadd.f32 %v2237, %v2289
        %2291 = vdwg.mxu0
        %2292 = vmatprep.subr.bf16.mxu0 %v1172
        %2293 = vmatpush1.bf16.msra.mxu0 %v1171
        %2294 = vmatprep.subr.bf16.mxu0 %v1174
        %2295 = vmatpush1.bf16.msra.mxu0 %v1173
        %2296 = vmatprep.subr.bf16.mxu0 %v1176
        %2297 = vmatpush1.bf16.msra.mxu0 %v1175
        %2298 = vmatprep.subr.bf16.mxu0 %v1178
        %2299 = vmatpush1.bf16.msra.mxu0 %v1177
        %2300 = vmatprep.subr.bf16.mxu0 %v1180
        %2301 = vmatpush1.bf16.msra.mxu0 %v1179
        %2302 = vmatprep.subr.bf16.mxu0 %v1182
        %2303 = vmatpush1.bf16.msra.mxu0 %v1181
        %2304 = vmatprep.subr.bf16.mxu0 %v1184
        %2305 = vmatpush1.bf16.msra.mxu0 %v1183
        %2306 = vmatprep.subr.bf16.mxu0 %v1186
        %2307 = vmatpush1.bf16.msra.mxu0 %v1185
        %2308 = vmatprep.subr.bf16.mxu0 %v1188
        %2309 = vmatpush1.bf16.msra.mxu0 %v1187
        %2310 = vmatprep.subr.bf16.mxu0 %v1190
        %2311 = vmatpush1.bf16.msra.mxu0 %v1189
        %2312 = vmatprep.subr.bf16.mxu0 %v1192
        %2313 = vmatpush1.bf16.msra.mxu0 %v1191
        %2314 = vmatprep.subr.bf16.mxu0 %v1194
        %2315 = vmatpush1.bf16.msra.mxu0 %v1193
        %2316 = vmatprep.subr.bf16.mxu0 %v1196
        %2317 = vmatpush1.bf16.msra.mxu0 %v1195
        %2318 = vmatprep.subr.bf16.mxu0 %v1198
        %2319 = vmatpush1.bf16.msra.mxu0 %v1197
        %2320 = vmatprep.subr.bf16.mxu0 %v1200
        %2321 = vmatpush1.bf16.msra.mxu0 %v1199
        %2322 = vmatprep.subr.bf16.mxu0 %v1202
        %2323 = vmatpush1.bf16.msra.mxu0 %v1201
        %2324 = vmatprep.mubr.bf16.mxu0 %v2179
        %2325 = vmatmul.mubr.bf16.gmra.mrb[0].mxu0 %v2178
        %v2326 = vpop.f32.mrb[0].mxu0
        %v2327 = vadd.f32 %v2274, %v2326
        %v2328 = vpop.f32.mrb[0].mxu0
        %v2329 = vadd.f32 %v2276, %v2328
        %v2330 = vpop.f32.mrb[0].mxu0
        %v2331 = vadd.f32 %v2278, %v2330
        %v2332 = vpop.f32.mrb[0].mxu0
        %v2333 = vadd.f32 %v2280, %v2332
        %2334 = vmatprep.mubr.bf16.mxu0 %v2185
        %2335 = vmatmul.mubr.bf16.gmra.mrb[0].mxu0 %v2184
        %v2336 = vpop.f32.mrb[0].mxu0
        %v2337 = vadd.f32 %v2284, %v2336
        %v2338 = vpop.f32.mrb[0].mxu0
        %v2339 = vadd.f32 %v2286, %v2338
        %v2340 = vpop.f32.mrb[0].mxu0
        %v2341 = vadd.f32 %v2288, %v2340
        %v2342 = vpop.f32.mrb[0].mxu0
        %v2343 = vadd.f32 %v2290, %v2342
        %2344 = vdwg.mxu0
        %v2345 = vmax.f32 %v2166, %v2327
        %v2346 = vmax.f32 %v2167, %v2329
        %v2347 = vmax.f32 %v2168, %v2331
        %v2348 = vmax.f32 %v2169, %v2333
        %v2349 = vmax.f32 %v2170, %v2337
        %v2350 = vmax.f32 %v2171, %v2339
        %v2351 = vmax.f32 %v2172, %v2341
        %v2352 = vmax.f32 %v2173, %v2343
        %v2353 = vmax.f32 %v2345, %v2346
        %v2354 = vmax.f32 %v2347, %v2348
        %v2355 = vmax.f32 %v2349, %v2350
        %v2356 = vmax.f32 %v2351, %v2352
        %v2357 = vld [vmem:[%s2] sm:$0x1]
        %v2359 = vlaneseq
        %v2360 = vshrl.u32 %v2359, 7
        %v2361 = vsub.s32 0, %v2360
        %v2362 = vrot.slane %v2357, %v2361
        %v2364 = vadd.f32 %v2353, %v2362
        %v2365 = vadd.f32 %v2354, %v2362
        %v2366 = vadd.f32 %v2355, %v2362
        %v2367 = vadd.f32 %v2356, %v2362
        %v2368 = vmax.f32 %v2364, 0.0
        %v2369 = vmax.f32 %v2365, 0.0
        %v2370 = vmax.f32 %v2366, 0.0
        %v2371 = vmax.f32 %v2367, 0.0
        %v2372 = vpack.c.bf16 %v2369, %v2368
        %v2373 = vpack.c.bf16 %v2371, %v2370
        %v2374 = vld [vmem:[#allocation6] sm:$0xff]
        %v2375 = vld [vmem:[#allocation6 + $0x8] sm:$0xff]
        %v2376 = vld [vmem:[#allocation6 + $0x10] sm:$0xff]
        %v2377 = vld [vmem:[#allocation6 + $0x18] sm:$0xff]
        %v2378 = vld [vmem:[#allocation6 + $0x20] sm:$0xff]
        %v2379 = vld [vmem:[#allocation6 + $0x28] sm:$0xff]
        %v2380 = vld [vmem:[#allocation6 + $0x30] sm:$0xff]
        %v2381 = vld [vmem:[#allocation6 + $0x38] sm:$0xff]
        %v2382 = vld [vmem:[#allocation6 + $0x40] sm:$0xff]
        %v2383 = vld [vmem:[#allocation6 + $0x48] sm:$0xff]
        %v2384 = vld [vmem:[#allocation6 + $0x50] sm:$0xff]
        %v2385 = vld [vmem:[#allocation6 + $0x58] sm:$0xff]
        %v2386 = vld [vmem:[#allocation6 + $0x60] sm:$0xff]
        %v2387 = vld [vmem:[#allocation6 + $0x68] sm:$0xff]
        %v2388 = vld [vmem:[#allocation6 + $0x70] sm:$0xff]
        %v2389 = vld [vmem:[#allocation6 + $0x78] sm:$0xff]
        %v2390 = vld [vmem:[%s4] sm:$0x3]
        %v2392 = vlaneseq
        %v2393 = vshrl.u32 %v2392, 7
        %v2394 = vsub.s32 0, %v2393
        %v2395 = vrot.slane %v2390, %v2394
        %v2396 = vlaneseq
        %v2397 = vshrl.u32 %v2396, 7
        %v2398 = vsub.s32 1, %v2397
        %v2399 = vrot.slane %v2390, %v2398
        %v2418 = vunpack.c.l.b16 %v2374
        %v2419 = vunpack.c.h.b16 %v2374
        %v2420 = vunpack.c.l.b16 %v2375
        %v2421 = vunpack.c.h.b16 %v2375
        %v2422 = vunpack.c.l.b16 %v2376
        %v2423 = vunpack.c.h.b16 %v2376
        %v2424 = vunpack.c.l.b16 %v2377
        %v2425 = vunpack.c.h.b16 %v2377
        %v2426 = vunpack.c.l.b16 %v2378
        %v2427 = vunpack.c.h.b16 %v2378
        %v2428 = vunpack.c.l.b16 %v2379
        %v2429 = vunpack.c.h.b16 %v2379
        %v2430 = vunpack.c.l.b16 %v2380
        %v2431 = vunpack.c.h.b16 %v2380
        %v2432 = vunpack.c.l.b16 %v2381
        %v2433 = vunpack.c.h.b16 %v2381
        %v2434 = vunpack.c.l.b16 %v2382
        %v2435 = vunpack.c.h.b16 %v2382
        %v2436 = vunpack.c.l.b16 %v2383
        %v2437 = vunpack.c.h.b16 %v2383
        %v2438 = vunpack.c.l.b16 %v2384
        %v2439 = vunpack.c.h.b16 %v2384
        %v2440 = vunpack.c.l.b16 %v2385
        %v2441 = vunpack.c.h.b16 %v2385
        %v2442 = vunpack.c.l.b16 %v2386
        %v2443 = vunpack.c.h.b16 %v2386
        %v2444 = vunpack.c.l.b16 %v2387
        %v2445 = vunpack.c.h.b16 %v2387
        %v2446 = vunpack.c.l.b16 %v2388
        %v2447 = vunpack.c.h.b16 %v2388
        %v2448 = vunpack.c.l.b16 %v2389
        %v2449 = vunpack.c.h.b16 %v2389
        %v2450 = vpack.c.b16 %v2420, %v2418
        %v2451 = vpack.c.b16 %v2421, %v2419
        %v2452 = vpack.c.b16 %v2424, %v2422
        %v2453 = vpack.c.b16 %v2425, %v2423
        %v2454 = vpack.c.b16 %v2428, %v2426
        %v2455 = vpack.c.b16 %v2429, %v2427
        %v2456 = vpack.c.b16 %v2432, %v2430
        %v2457 = vpack.c.b16 %v2433, %v2431
        %v2458 = vpack.c.b16 %v2436, %v2434
        %v2459 = vpack.c.b16 %v2437, %v2435
        %v2460 = vpack.c.b16 %v2440, %v2438
        %v2461 = vpack.c.b16 %v2441, %v2439
        %v2462 = vpack.c.b16 %v2444, %v2442
        %v2463 = vpack.c.b16 %v2445, %v2443
        %v2464 = vpack.c.b16 %v2448, %v2446
        %v2465 = vpack.c.b16 %v2449, %v2447
        %2482 = vmatprep.subr.bf16.mxu0 %v2451
        %2483 = vmatpush1.bf16.msra.mxu0 %v2450
        %2484 = vmatprep.subr.bf16.mxu0 %v2453
        %2485 = vmatpush1.bf16.msra.mxu0 %v2452
        %2486 = vmatprep.subr.bf16.mxu0 %v2455
        %2487 = vmatpush1.bf16.msra.mxu0 %v2454
        %2488 = vmatprep.subr.bf16.mxu0 %v2457
        %2489 = vmatpush1.bf16.msra.mxu0 %v2456
        %2490 = vmatprep.subr.bf16.mxu0 %v2459
        %2491 = vmatpush1.bf16.msra.mxu0 %v2458
        %2492 = vmatprep.subr.bf16.mxu0 %v2461
        %2493 = vmatpush1.bf16.msra.mxu0 %v2460
        %2494 = vmatprep.subr.bf16.mxu0 %v2463
        %2495 = vmatpush1.bf16.msra.mxu0 %v2462
        %2496 = vmatprep.subr.bf16.mxu0 %v2465
        %2497 = vmatpush1.bf16.msra.mxu0 %v2464
        %2498 = vmatprep.subr.bf16.mxu0 0
        %2499 = vmatpush1.bf16.msra.mxu0 0
        %2500 = vmatprep.subr.bf16.mxu0 0
        %2501 = vmatpush1.bf16.msra.mxu0 0
        %2502 = vmatprep.subr.bf16.mxu0 0
        %2503 = vmatpush1.bf16.msra.mxu0 0
        %2504 = vmatprep.subr.bf16.mxu0 0
        %2505 = vmatpush1.bf16.msra.mxu0 0
        %2506 = vmatprep.subr.bf16.mxu0 0
        %2507 = vmatpush1.bf16.msra.mxu0 0
        %2508 = vmatprep.subr.bf16.mxu0 0
        %2509 = vmatpush1.bf16.msra.mxu0 0
        %2510 = vmatprep.subr.bf16.mxu0 0
        %2511 = vmatpush1.bf16.msra.mxu0 0
        %2512 = vmatprep.subr.bf16.mxu0 0
        %2513 = vmatpush1.bf16.msra.mxu0 0
        %2514 = vmatprep.mubr.bf16.mxu0 0
        %2515 = vmatmul.mubr.bf16.gmra.mrb[0].mxu0 %v2372
        %v2516 = vpop.f32.mrb[0].mxu0
        %v2517 = vadd.f32 %v2395, %v2516
        %v2518 = vpop.f32.mrb[0].mxu0
        %v2519 = vadd.f32 %v2399, %v2518
        %v2520 = vpop.f32.mrb[0].mxu0
        %v2521 = vadd.f32 %v2395, %v2520
        %v2522 = vpop.f32.mrb[0].mxu0
        %v2523 = vadd.f32 %v2399, %v2522
        %2524 = vmatprep.mubr.bf16.mxu0 0
        %2525 = vmatmul.mubr.bf16.gmra.mrb[0].mxu0 %v2373
        %v2526 = vpop.f32.mrb[0].mxu0
        %v2527 = vadd.f32 %v2395, %v2526
        %v2528 = vpop.f32.mrb[0].mxu0
        %v2529 = vadd.f32 %v2399, %v2528
        %v2530 = vpop.f32.mrb[0].mxu0
        %v2531 = vadd.f32 %v2395, %v2530
        %v2532 = vpop.f32.mrb[0].mxu0
        %v2533 = vadd.f32 %v2399, %v2532
        %2534 = vdwg.mxu0
        %v2535 = vmax.f32 %v2517, 0.0
        %v2536 = vmax.f32 %v2521, 0.0
        %v2537 = vmax.f32 %v2527, 0.0
        %v2538 = vmax.f32 %v2531, 0.0
        %v2539 = vxor.u32 %v2519, 2147483648
        %v2540 = vxor.u32 %v2523, 2147483648
        %v2541 = vxor.u32 %v2529, 2147483648
        %v2542 = vxor.u32 %v2533, 2147483648
        %v2543 = vmul.f32 %v2539, 1.442695
        %v2544 = vpow.pop %v2543
        %v2545 = vmul.f32 %v2540, 1.442695
        %v2546 = vpow.pop %v2545
        %v2547 = vmul.f32 %v2541, 1.442695
        %v2548 = vpow.pop %v2547
        %v2549 = vmul.f32 %v2542, 1.442695
        %v2550 = vpow.pop %v2549
        %v2551 = vadd.f32 %v2544, 1.0
        %v2552 = vadd.f32 %v2546, 1.0
        %v2553 = vadd.f32 %v2548, 1.0
        %v2554 = vadd.f32 %v2550, 1.0
        %v2555 = vrcp.pop %v2551
        %v2556 = vmul.f32 1.0, %v2555
        %v2557 = vrcp.pop %v2552
        %v2558 = vmul.f32 1.0, %v2557
        %v2559 = vrcp.pop %v2553
        %v2560 = vmul.f32 1.0, %v2559
        %v2561 = vrcp.pop %v2554
        %v2562 = vmul.f32 1.0, %v2561
        %v2563 = vsub.f32 %v2535, %v2368
        %v2564 = vsub.f32 %v2536, %v2369
        %v2565 = vsub.f32 %v2537, %v2370
        %v2566 = vsub.f32 %v2538, %v2371
        %v2567 = vmul.f32 %v2556, %v2563
        %v2568 = vmul.f32 %v2558, %v2564
        %v2569 = vmul.f32 %v2560, %v2565
        %v2570 = vmul.f32 %v2562, %v2566
        %v2571 = vadd.f32 %v2368, %v2567
        %v2572 = vadd.f32 %v2369, %v2568
        %v2573 = vadd.f32 %v2370, %v2569
        %v2574 = vadd.f32 %v2371, %v2570
        %2575 = vst [vmem:[%s248] sm:$0xff] %v2571
        %2576 = vst [vmem:[%s248 + $0x8] sm:$0xff] %v2572
        %2577 = vst [vmem:[%s248 + $0x10] sm:$0xff] %v2573
        %2578 = vst [vmem:[%s248 + $0x18] sm:$0xff] %v2574
        %s2579 = sand.u32 %s139, 1
        %s2580 = scalar_lea.sflag [#allocation5], %s2579
        %s2581 = sand.u32 %s139, 1
        %s2582 = smul.addr %s2581, 32
        %s2583 = scalar_lea.vmem [#allocation8], %s2582
        // Predicated region
        $region49: #{tpu_custom_call.1} parent=39 // pred_check
          %p2584 = pneg %p149
        $region50: #{tpu_custom_call.1} parent=39 // pred_check_branch
          %2586 = sbr.rel (%p2584) target = $region52
        $region51: #{tpu_custom_call.1} parent=39 // pred_region
          %s2587 = smul.u32 4, %s21
          %s2589 = ssub.s32 512, 512
          %2590 = vsyncadd %s2580, %s2589
          %s2591 = smul.addr %s2587, 128
          %s2592 = scalar_lea.hbm %s5, %s2591
          %s2593 = sshll.u32 %s2583, 4
          %s2594 = int_to_ptr.vmem [resolvable:$true] %s2593
          %2599 = dma.vmem_to_hbm [thread:$0]  %s2594, 512, %s2592, %s2580, 128, 128, 8
        $region52: #{tpu_custom_call.1} parent=39 // pred_fallthru
          _
      $region40: #{tpu_custom_call.1} parent=5 // pred_fallthru
        _
      %p2600 = scmp.le.s32.totalorder 2, %s16
      // Predicated region
      $region53: #{tpu_custom_call.1} parent=5 // pred_check
        %p2601 = pneg %p2600
      $region54: #{tpu_custom_call.1} parent=5 // pred_check_branch
        %2603 = sbr.rel (%p2601) target = $region56
      $region55: #{tpu_custom_call.1} parent=5 // pred_region
        %s2604 = ssub.s32 %s16, 2
        // Predicated region
        $region57: #{tpu_custom_call.1} parent=55 // pred_check
          %p2605 = pneg %p155
        $region58: #{tpu_custom_call.1} parent=55 // pred_check_branch
          %2607 = sbr.rel (%p2605) target = $region60
        $region59: #{tpu_custom_call.1} parent=55 // pred_region
          %s2608 = sand.u32 %s140, 1
          %s2609 = scalar_lea.sflag [#allocation5], %s2608
          %s2610 = sand.u32 %s140, 1
          %s2611 = smul.addr %s2610, 32
          %s2612 = scalar_lea.vmem [#allocation8], %s2611
          %2613 = dma.done %s2609, 512
        $region60: #{tpu_custom_call.1} parent=55 // pred_fallthru
          _
      $region56: #{tpu_custom_call.1} parent=5 // pred_fallthru
        _
    $region6: #{tpu_custom_call.1} parent=1 // loop_footer
      %s20 = sadd.s32 1, %s16
    $region7: #{tpu_custom_call.1} parent=1 // loop_footer_branch
      %15 = sbr.rel target = $region3
    $region8: #{tpu_custom_call.1} parent=1 // loop_exit
      _
    %2614 = vsyncpa [#allocation4], 1
    %s2615 = scalar_lea.sflag [#allocation4], 1
    %2616 = vsyncpa %s2615, 1
    %2617 = vsyncpa [#allocation7], 1
    %2618 = vsyncpa [#allocation5], 1
    %s2619 = scalar_lea.sflag [#allocation5], 1
    %2620 = vsyncpa %s2619, 1

</llo_original>
